<compile_context>
chip_gen: v7x
topology: tpu7x:2x2x1
jax: 0.10.0
libtpu: 0.0.40
codegen_flags: <defaults>
</compile_context>

<pallas_src>
import jax
import jax.numpy as jnp
from jax.experimental import pallas as pl
from jax.experimental.pallas import tpu as pltpu


# ---------------------------------------------------------------------------
# Kernels
# ---------------------------------------------------------------------------

def _conv3x3_s2_kernel(x_ref, halo_ref, w12_ref, w0_ref, b_ref, o_ref,
                       acc_ref, acc0_ref):
    # x_ref   : (th, 2, Wo, 2C) input rows [2*th*i, 2*th*(i+1)), W-paired;
    #           plane 0 = even rows (2r), plane 1 = odd rows (2r+1)
    # halo_ref: (Wo, 2C)        input row 2*th*i - 1 (masked to 0 on tile 0)
    # w12_ref : (3, 2C, Cout)   [kh] -> taps kw=1 (rows 0:C) / kw=2 (rows C:2C)
    # w0_ref  : (3, 2C, Cout)   [kh] -> tap  kw=0 in rows C:2C, zeros in 0:C
    # b_ref   : (1, Cout)       f32 bias
    # o_ref   : (th, Wo, Cout)
    # acc_ref / acc0_ref : (th*Wo, Cout) f32 scratch accumulators
    th, _, Wo, C2 = x_ref.shape
    Cout = o_ref.shape[-1]
    M = th * Wo
    f32 = jnp.float32

    # Row sets come straight off the Ref (no full-slab value, no concat).
    even = x_ref[:, 0].reshape(M, C2)          # kh = 1 rows (2r)
    odd = x_ref[:, 1].reshape(M, C2)           # kh = 2 rows (2r+1)

    acc_ref[...] = jnp.dot(even, w12_ref[1], preferred_element_type=f32)
    acc_ref[...] += jnp.dot(odd, w12_ref[2], preferred_element_type=f32)
    acc0_ref[...] = jnp.dot(even, w0_ref[1], preferred_element_type=f32)
    acc0_ref[...] += jnp.dot(odd, w0_ref[2], preferred_element_type=f32)

    # kh = 0 rows (2r-1): the tile's first output row uses the halo (zero on
    # the first tile = top padding); the rest use odd rows 0..th-2.  Results
    # accumulate into disjoint row ranges of the scratch accumulators.
    halo = halo_ref[...]
    halo = halo * (pl.program_id(1) > 0).astype(halo.dtype)
    acc_ref[0:Wo, :] += jnp.dot(halo, w12_ref[0], preferred_element_type=f32)
    acc0_ref[0:Wo, :] += jnp.dot(halo, w0_ref[0], preferred_element_type=f32)
    if th > 1:
        prev_odd = x_ref[0:th - 1, 1].reshape((th - 1) * Wo, C2)
        acc_ref[Wo:, :] += jnp.dot(prev_odd, w12_ref[0],
                                   preferred_element_type=f32)
        acc0_ref[Wo:, :] += jnp.dot(prev_odd, w0_ref[0],
                                    preferred_element_type=f32)

    # kw=0 contributions act on the *previous* column pair: shift them one
    # output column right (column 0 receives the left zero padding).  This
    # touches only the small, budget-bounded f32 accumulator, never the slab.
    # TODO(synk): could become a pltpu.roll (XLU) + iota mask to avoid the
    #             small sublane-relayout copy.
    a = acc_ref[...].reshape(th, Wo, Cout)
    a0 = acc0_ref[...].reshape(th, Wo, Cout)
    if Wo > 1:
        shifted = jnp.concatenate(
            [jnp.zeros((th, 1, Cout), f32), a0[:, :Wo - 1, :]], axis=1)
    else:
        shifted = jnp.zeros((th, 1, Cout), f32)
    o_ref[...] = (a + shifted + b_ref[...]).astype(o_ref.dtype)


def _avgpool2x2_kernel(x_ref, o_ref):
    # x_ref: (th, 2, Wo, 2C) input rows [2*th*i, 2*th*(i+1)), W paired
    # o_ref: (th, Wo, C)
    C = o_ref.shape[-1]
    s = x_ref[:, 0, :, 0:C].astype(jnp.float32)
    s = s + x_ref[:, 0, :, C:2 * C]
    s = s + x_ref[:, 1, :, 0:C]
    s = s + x_ref[:, 1, :, C:2 * C]
    o_ref[...] = (s * 0.25).astype(o_ref.dtype)


# ---------------------------------------------------------------------------
# Tiling helpers
# ---------------------------------------------------------------------------

def _round_up(v, m):
    return ((v + m - 1) // m) * m


def _vmem_budget_bytes():
    """Generation-aware scoped-VMEM budget (fallback assumes v7x, 64 MiB)."""
    try:
        cap = pltpu.get_tpu_info().vmem_capacity_bytes
    except Exception:
        cap = 64 << 20
    return int(min(cap * 3 // 4, 96 << 20))


def _pick_row_tile(ho, n_batch, per_row_bytes, fixed_bytes, budget_bytes):
    """Largest output-row tile fitting the budget; no divisibility demanded."""
    avail = budget_bytes - fixed_bytes
    th = avail // per_row_bytes if per_row_bytes > 0 else ho
    th = max(1, min(int(ho), int(th)))
    # v7x megacore / pipeline health: keep a handful of grid steps when that
    # does not shrink the tile below ~8 output rows.
    while th > 8 and n_batch * pl.cdiv(ho, th) < 8:
        th = pl.cdiv(th, 2)
    return int(th)


# ---------------------------------------------------------------------------
# Wrappers (PyTorch NCHW interface)
# ---------------------------------------------------------------------------

def downsample_conv2d(x_nchw, w_oihw, b, *, compute_dtype=None):
    """Downsample(use_conv=True, dims=2): Conv2d(C, Cout, 3, stride=2, pad=1)."""
    N, C, H, W = x_nchw.shape
    Cout = w_oihw.shape[0]
    Ho = (H + 1) // 2
    Wo = (W + 1) // 2
    out_dtype = x_nchw.dtype
    cdt = out_dtype if compute_dtype is None else jnp.dtype(compute_dtype)

    # Boundary glue: NCHW -> NHWC (+ optional bf16 cast, fused by XLA).  The
    # padding=1 boundary is handled in-kernel, so even H/W needs no jnp.pad.
    x = jnp.transpose(x_nchw, (0, 2, 3, 1)).astype(cdt)
    pad_h, pad_w = 2 * Ho - H, 2 * Wo - W
    if pad_h or pad_w:
        # TODO(synk): odd spatial sizes still take one trailing-pad HBM pass.
        x = jnp.pad(x, ((0, 0), (0, pad_h), (0, pad_w), (0, 0)))
    # Contiguous reshape: rows split into (Ho, even/odd), columns paired into
    # the lane dim -> (N, Ho, 2, Wo, 2C).
    x5 = x.reshape(N, Ho, 2, Wo, 2 * C)

    # PyTorch OIHW -> HWIO.  kw=1,2 fuse into one K=2C tap per kh; kw=0 acts
    # on the right half of the previous pair, so its left half is zero-padded
    # (full-lane MXU dot instead of an in-kernel lane-half extraction).
    w_hwio = jnp.transpose(w_oihw, (2, 3, 1, 0)).astype(cdt)     # (3,3,C,Cout)
    w12 = jnp.concatenate([w_hwio[:, 1], w_hwio[:, 2]], axis=1)  # (3,2C,Cout)
    w0 = jnp.concatenate([jnp.zeros_like(w_hwio[:, 0]), w_hwio[:, 0]], axis=1)
    b2 = b.reshape(1, Cout).astype(jnp.float32)

    # VMEM budget: per-output-row bytes use VMEM-padded dims, double-buffered
    # inputs/outputs, plus the f32 scratch; resident weights come off the top.
    csize = jnp.dtype(cdt).itemsize
    c2p = _round_up(2 * C, 128)
    cop = _round_up(Cout, 128)
    wop = _round_up(Wo, 8)
    per_row = (2 * wop * c2p * csize + wop * cop * csize) * 2 \
        + 2 * wop * cop * 4
    fixed = (2 * 3 * c2p * cop * csize + 8 * cop * 4) * 2 \
        + 2 * wop * c2p * csize
    budget = _vmem_budget_bytes()
    th = _pick_row_tile(Ho, N, per_row, fixed, budget // 2)
    nt = pl.cdiv(Ho, th)

    out = pl.pallas_call(
        _conv3x3_s2_kernel,
        out_shape=jax.ShapeDtypeStruct((N, Ho, Wo, Cout), out_dtype),
        grid_spec=pltpu.PrefetchScalarGridSpec(
            num_scalar_prefetch=0,
            grid=(N, nt),
            in_specs=[
                # main row slab: input rows [2*th*i, 2*th*(i+1)) as even/odd planes
                pl.BlockSpec((None, th, 2, Wo, 2 * C),
                             lambda n, i: (n, i, 0, 0, 0)),
                # 1-row top halo: input row 2*th*i - 1 (clamped; masked on tile 0)
                pl.BlockSpec((None, None, None, Wo, 2 * C),
                             lambda n, i: (n, jnp.maximum(i * th - 1, 0), 1, 0, 0)),
                # weights / bias: constant index -> fetched once, VMEM-resident
                pl.BlockSpec((3, 2 * C, Cout), lambda n, i: (0, 0, 0)),
                pl.BlockSpec((3, 2 * C, Cout), lambda n, i: (0, 0, 0)),
                pl.BlockSpec((1, Cout), lambda n, i: (0, 0)),
            ],
            out_specs=pl.BlockSpec((None, th, Wo, Cout),
                                   lambda n, i: (n, i, 0, 0)),
            scratch_shapes=[pltpu.VMEM((th * Wo, Cout), jnp.float32),
                            pltpu.VMEM((th * Wo, Cout), jnp.float32)],
        ),
        compiler_params=pltpu.CompilerParams(
            dimension_semantics=("parallel", "parallel"),
            vmem_limit_bytes=budget),
    )(x5, x5, w12, w0, b2)

    return jnp.transpose(out, (0, 3, 1, 2))                      # back to NCHW


def downsample_avgpool2d(x_nchw):
    """Downsample(use_conv=False, dims=2): AvgPool2d(kernel=2, stride=2)."""
    N, C, H, W = x_nchw.shape
    Ho, Wo = H // 2, W // 2
    x = jnp.transpose(x_nchw, (0, 2, 3, 1))
    if H != 2 * Ho or W != 2 * Wo:
        x = x[:, :2 * Ho, :2 * Wo, :]
    x5 = x.reshape(N, Ho, 2, Wo, 2 * C)        # contiguous reshape (W pairing)

    isize = x.dtype.itemsize
    c2p = _round_up(2 * C, 128)
    cp = _round_up(C, 128)
    wop = _round_up(Wo, 8)
    per_row = (2 * wop * c2p + wop * cp) * isize * 2
    budget = _vmem_budget_bytes()
    th = _pick_row_tile(Ho, N, per_row, 0, budget // 2)
    nt = pl.cdiv(Ho, th)

    out = pl.pallas_call(
        _avgpool2x2_kernel,
        out_shape=jax.ShapeDtypeStruct((N, Ho, Wo, C), x.dtype),
        grid_spec=pltpu.PrefetchScalarGridSpec(
            num_scalar_prefetch=0,
            grid=(N, nt),
            in_specs=[pl.BlockSpec((None, th, 2, Wo, 2 * C),
                                   lambda n, i: (n, i, 0, 0, 0))],
            out_specs=pl.BlockSpec((None, th, Wo, C),
                                   lambda n, i: (n, i, 0, 0)),
        ),
        compiler_params=pltpu.CompilerParams(
            dimension_semantics=("parallel", "parallel"),
            vmem_limit_bytes=budget),
    )(x5)

    return jnp.transpose(out, (0, 3, 1, 2))                      # back to NCHW


# ---------------------------------------------------------------------------
# Self-test
# ---------------------------------------------------------------------------

if __name__ == "__main__":
    key = jax.random.PRNGKey(0)
    k1, k2, k3 = jax.random.split(key, 3)
    N, C, H, W = 2, 4, 16, 16
    Cout = C  # out_channels=None -> channels

    x = jax.random.normal(k1, (N, C, H, W), dtype=jnp.float32)
    w = 0.1 * jax.random.normal(k2, (Cout, C, 3, 3), dtype=jnp.float32)
    b = 0.1 * jax.random.normal(k3, (Cout,), dtype=jnp.float32)

    # ---- use_conv=True path (f32 compute) ----
    y_conv = downsample_conv2d(x, w, b)
    jax.block_until_ready(y_conv)
    assert y_conv.shape == (N, Cout, H // 2, W // 2)

    xhwc = jnp.transpose(x, (0, 2, 3, 1))
    whwio = jnp.transpose(w, (2, 3, 1, 0))
    ref = jax.lax.conv_general_dilated(
        xhwc, whwio, window_strides=(2, 2), padding=((1, 1), (1, 1)),
        dimension_numbers=("NHWC", "HWIO", "NHWC"))
    ref = jnp.transpose(ref, (0, 3, 1, 2)) + b.reshape(1, Cout, 1, 1)
    assert jnp.allclose(y_conv, ref, atol=1e-4, rtol=1e-4), \
        float(jnp.max(jnp.abs(y_conv - ref)))

    # ---- use_conv=True path (bf16 compute for v6e/v7x MXU; f32 accumulate) ----
    y_bf16 = downsample_conv2d(x, w, b, compute_dtype=jnp.bfloat16)
    jax.block_until_ready(y_bf16)
    assert jnp.allclose(y_bf16, ref, atol=5e-2, rtol=5e-2), \
        float(jnp.max(jnp.abs(y_bf16 - ref)))

    # ---- use_conv=False path ----
    y_pool = downsample_avgpool2d(x)
    jax.block_until_ready(y_pool)
    ref_pool = x.reshape(N, C, H // 2, 2, W // 2, 2).mean(axis=(3, 5))
    assert jnp.allclose(y_pool, ref_pool, atol=1e-5, rtol=1e-5)

    print("KERNEL_OK")
</pallas_src>

<mosaic_0001>
module attributes {stable_mosaic.version = 11 : i64} {
  func.func @_conv3x3_s2_kernel(%arg0: i32, %arg1: i32, %arg2: memref<1x8x2x8x8xf32, #tpu.memory_space<vmem>>, %arg3: memref<1x1x1x8x8xf32, #tpu.memory_space<vmem>>, %arg4: memref<3x8x4xf32, #tpu.memory_space<vmem>>, %arg5: memref<3x8x4xf32, #tpu.memory_space<vmem>>, %arg6: memref<1x4xf32, #tpu.memory_space<vmem>>, %arg7: memref<1x8x8x4xf32, #tpu.memory_space<vmem>>, %arg8: memref<64x4xf32, #tpu.memory_space<vmem>>, %arg9: memref<64x4xf32, #tpu.memory_space<vmem>>) attributes {dimension_semantics = [#tpu.dimension_semantics<parallel>, #tpu.dimension_semantics<parallel>], iteration_bounds = array<i64: 2, 1>, scalar_prefetch = 0 : i64, scratch_operands = 2 : i64, tpu.core_type = #tpu.core_type<tc>, window_params = [{transform_indices = @transform_0, window_bounds = array<i64: 1, 8, 2, 8, 8>}, {transform_indices = @transform_1, window_bounds = array<i64: 1, 1, 1, 8, 8>}, {pipeline_mode = #tpu.pipeline_mode<synchronous>, transform_indices = @transform_2, window_bounds = array<i64: 3, 8, 4>}, {pipeline_mode = #tpu.pipeline_mode<synchronous>, transform_indices = @transform_3, window_bounds = array<i64: 3, 8, 4>}, {pipeline_mode = #tpu.pipeline_mode<synchronous>, transform_indices = @transform_4, window_bounds = array<i64: 1, 4>}, {transform_indices = @transform_5, window_bounds = array<i64: 1, 8, 8, 4>}]} {
    %c0 = arith.constant 0 : index
    %c0_0 = arith.constant 0 : index
    %c0_1 = arith.constant 0 : index
    %c0_2 = arith.constant 0 : index
    %c0_3 = arith.constant 0 : index
    %0 = vector.load %arg2[%c0, %c0_0, %c0_1, %c0_2, %c0_3] : memref<1x8x2x8x8xf32, #tpu.memory_space<vmem>>, vector<1x8x1x8x8xf32>
    %1 = vector.shape_cast %0 : vector<1x8x1x8x8xf32> to vector<8x8x8xf32>
    %2 = vector.shape_cast %1 : vector<8x8x8xf32> to vector<64x8xf32>
    %c0_4 = arith.constant 0 : index
    %c0_5 = arith.constant 0 : index
    %c1 = arith.constant 1 : index
    %c0_6 = arith.constant 0 : index
    %c0_7 = arith.constant 0 : index
    %3 = vector.load %arg2[%c0_4, %c0_5, %c1, %c0_6, %c0_7] : memref<1x8x2x8x8xf32, #tpu.memory_space<vmem>>, vector<1x8x1x8x8xf32>
    %4 = vector.shape_cast %3 : vector<1x8x1x8x8xf32> to vector<8x8x8xf32>
    %5 = vector.shape_cast %4 : vector<8x8x8xf32> to vector<64x8xf32>
    %c1_8 = arith.constant 1 : index
    %c0_9 = arith.constant 0 : index
    %c0_10 = arith.constant 0 : index
    %6 = vector.load %arg4[%c1_8, %c0_9, %c0_10] : memref<3x8x4xf32, #tpu.memory_space<vmem>>, vector<1x8x4xf32>
    %7 = vector.shape_cast %6 : vector<1x8x4xf32> to vector<8x4xf32>
    %cst = arith.constant dense<0.000000e+00> : vector<64x4xf32>
    %8 = tpu.matmul %2, %7, %cst {dimension_numbers = #tpu.dot_dimension_numbers<[1], [0], [0], [1], [0, 0, 1, 1], [], []>} : vector<64x8xf32>, vector<8x4xf32>, vector<64x4xf32> -> vector<64x4xf32>
    %c0_11 = arith.constant 0 : index
    %c0_12 = arith.constant 0 : index
    %9 = vector.load %arg8[%c0_11, %c0_12] : memref<64x4xf32, #tpu.memory_space<vmem>>, vector<64x4xf32>
    tpu.vector_store %arg8[%c0_11, %c0_12], %8 {strides = array<i32>} : memref<64x4xf32, #tpu.memory_space<vmem>>, vector<64x4xf32>,
    %c0_13 = arith.constant 0 : index
    %c0_14 = arith.constant 0 : index
    %10 = vector.load %arg8[%c0_13, %c0_14] : memref<64x4xf32, #tpu.memory_space<vmem>>, vector<64x4xf32>
    %c2 = arith.constant 2 : index
    %c0_15 = arith.constant 0 : index
    %c0_16 = arith.constant 0 : index
    %11 = vector.load %arg4[%c2, %c0_15, %c0_16] : memref<3x8x4xf32, #tpu.memory_space<vmem>>, vector<1x8x4xf32>
    %12 = vector.shape_cast %11 : vector<1x8x4xf32> to vector<8x4xf32>
    %cst_17 = arith.constant dense<0.000000e+00> : vector<64x4xf32>
    %13 = tpu.matmul %5, %12, %cst_17 {dimension_numbers = #tpu.dot_dimension_numbers<[1], [0], [0], [1], [0, 0, 1, 1], [], []>} : vector<64x8xf32>, vector<8x4xf32>, vector<64x4xf32> -> vector<64x4xf32>
    %14 = arith.addf %10, %13 : vector<64x4xf32>
    %c0_18 = arith.constant 0 : index
    %c0_19 = arith.constant 0 : index
    %15 = vector.load %arg8[%c0_18, %c0_19] : memref<64x4xf32, #tpu.memory_space<vmem>>, vector<64x4xf32>
    tpu.vector_store %arg8[%c0_18, %c0_19], %14 {strides = array<i32>} : memref<64x4xf32, #tpu.memory_space<vmem>>, vector<64x4xf32>,
    %c1_20 = arith.constant 1 : index
    %c0_21 = arith.constant 0 : index
    %c0_22 = arith.constant 0 : index
    %16 = vector.load %arg5[%c1_20, %c0_21, %c0_22] : memref<3x8x4xf32, #tpu.memory_space<vmem>>, vector<1x8x4xf32>
    %17 = vector.shape_cast %16 : vector<1x8x4xf32> to vector<8x4xf32>
    %cst_23 = arith.constant dense<0.000000e+00> : vector<64x4xf32>
    %18 = tpu.matmul %2, %17, %cst_23 {dimension_numbers = #tpu.dot_dimension_numbers<[1], [0], [0], [1], [0, 0, 1, 1], [], []>} : vector<64x8xf32>, vector<8x4xf32>, vector<64x4xf32> -> vector<64x4xf32>
    %c0_24 = arith.constant 0 : index
    %c0_25 = arith.constant 0 : index
    %19 = vector.load %arg9[%c0_24, %c0_25] : memref<64x4xf32, #tpu.memory_space<vmem>>, vector<64x4xf32>
    tpu.vector_store %arg9[%c0_24, %c0_25], %18 {strides = array<i32>} : memref<64x4xf32, #tpu.memory_space<vmem>>, vector<64x4xf32>,
    %c0_26 = arith.constant 0 : index
    %c0_27 = arith.constant 0 : index
    %20 = vector.load %arg9[%c0_26, %c0_27] : memref<64x4xf32, #tpu.memory_space<vmem>>, vector<64x4xf32>
    %c2_28 = arith.constant 2 : index
    %c0_29 = arith.constant 0 : index
    %c0_30 = arith.constant 0 : index
    %21 = vector.load %arg5[%c2_28, %c0_29, %c0_30] : memref<3x8x4xf32, #tpu.memory_space<vmem>>, vector<1x8x4xf32>
    %22 = vector.shape_cast %21 : vector<1x8x4xf32> to vector<8x4xf32>
    %cst_31 = arith.constant dense<0.000000e+00> : vector<64x4xf32>
    %23 = tpu.matmul %5, %22, %cst_31 {dimension_numbers = #tpu.dot_dimension_numbers<[1], [0], [0], [1], [0, 0, 1, 1], [], []>} : vector<64x8xf32>, vector<8x4xf32>, vector<64x4xf32> -> vector<64x4xf32>
    %24 = arith.addf %20, %23 : vector<64x4xf32>
    %c0_32 = arith.constant 0 : index
    %c0_33 = arith.constant 0 : index
    %25 = vector.load %arg9[%c0_32, %c0_33] : memref<64x4xf32, #tpu.memory_space<vmem>>, vector<64x4xf32>
    tpu.vector_store %arg9[%c0_32, %c0_33], %24 {strides = array<i32>} : memref<64x4xf32, #tpu.memory_space<vmem>>, vector<64x4xf32>,
    %c0_34 = arith.constant 0 : index
    %c0_35 = arith.constant 0 : index
    %c0_36 = arith.constant 0 : index
    %c0_37 = arith.constant 0 : index
    %c0_38 = arith.constant 0 : index
    %26 = vector.load %arg3[%c0_34, %c0_35, %c0_36, %c0_37, %c0_38] : memref<1x1x1x8x8xf32, #tpu.memory_space<vmem>>, vector<1x1x1x8x8xf32>
    %27 = vector.shape_cast %26 : vector<1x1x1x8x8xf32> to vector<8x8xf32>
    %c0_i32 = arith.constant 0 : i32
    %28 = arith.cmpi sgt, %arg1, %c0_i32 : i32
    %29 = arith.extui %28 : i1 to i32
    %30 = arith.sitofp %29 : i32 to f32
    %31 = vector.broadcast %30 : f32 to vector<8x8xf32>
    %32 = arith.mulf %27, %31 : vector<8x8xf32>
    %c0_39 = arith.constant 0 : index
    %c0_40 = arith.constant 0 : index
    %33 = vector.load %arg8[%c0_39, %c0_40] : memref<64x4xf32, #tpu.memory_space<vmem>>, vector<8x4xf32>
    %c0_41 = arith.constant 0 : index
    %c0_42 = arith.constant 0 : index
    %c0_43 = arith.constant 0 : index
    %34 = vector.load %arg4[%c0_41, %c0_42, %c0_43] : memref<3x8x4xf32, #tpu.memory_space<vmem>>, vector<1x8x4xf32>
    %35 = vector.shape_cast %34 : vector<1x8x4xf32> to vector<8x4xf32>
    %cst_44 = arith.constant dense<0.000000e+00> : vector<8x4xf32>
    %36 = tpu.matmul %32, %35, %cst_44 {dimension_numbers = #tpu.dot_dimension_numbers<[1], [0], [0], [1], [0, 0, 1, 1], [], []>} : vector<8x8xf32>, vector<8x4xf32>, vector<8x4xf32> -> vector<8x4xf32>
    %37 = arith.addf %33, %36 : vector<8x4xf32>
    %c0_45 = arith.constant 0 : index
    %c0_46 = arith.constant 0 : index
    %38 = vector.load %arg8[%c0_45, %c0_46] : memref<64x4xf32, #tpu.memory_space<vmem>>, vector<8x4xf32>
    tpu.vector_store %arg8[%c0_45, %c0_46], %37 {strides = array<i32>} : memref<64x4xf32, #tpu.memory_space<vmem>>, vector<8x4xf32>,
    %c0_47 = arith.constant 0 : index
    %c0_48 = arith.constant 0 : index
    %39 = vector.load %arg9[%c0_47, %c0_48] : memref<64x4xf32, #tpu.memory_space<vmem>>, vector<8x4xf32>
    %c0_49 = arith.constant 0 : index
    %c0_50 = arith.constant 0 : index
    %c0_51 = arith.constant 0 : index
    %40 = vector.load %arg5[%c0_49, %c0_50, %c0_51] : memref<3x8x4xf32, #tpu.memory_space<vmem>>, vector<1x8x4xf32>
    %41 = vector.shape_cast %40 : vector<1x8x4xf32> to vector<8x4xf32>
    %cst_52 = arith.constant dense<0.000000e+00> : vector<8x4xf32>
    %42 = tpu.matmul %32, %41, %cst_52 {dimension_numbers = #tpu.dot_dimension_numbers<[1], [0], [0], [1], [0, 0, 1, 1], [], []>} : vector<8x8xf32>, vector<8x4xf32>, vector<8x4xf32> -> vector<8x4xf32>
    %43 = arith.addf %39, %42 : vector<8x4xf32>
    %c0_53 = arith.constant 0 : index
    %c0_54 = arith.constant 0 : index
    %44 = vector.load %arg9[%c0_53, %c0_54] : memref<64x4xf32, #tpu.memory_space<vmem>>, vector<8x4xf32>
    tpu.vector_store %arg9[%c0_53, %c0_54], %43 {strides = array<i32>} : memref<64x4xf32, #tpu.memory_space<vmem>>, vector<8x4xf32>,
    %c0_55 = arith.constant 0 : index
    %c0_56 = arith.constant 0 : index
    %c1_57 = arith.constant 1 : index
    %c0_58 = arith.constant 0 : index
    %c0_59 = arith.constant 0 : index
    %45 = vector.load %arg2[%c0_55, %c0_56, %c1_57, %c0_58, %c0_59] : memref<1x8x2x8x8xf32, #tpu.memory_space<vmem>>, vector<1x7x1x8x8xf32>
    %46 = vector.shape_cast %45 : vector<1x7x1x8x8xf32> to vector<7x8x8xf32>
    %47 = vector.shape_cast %46 : vector<7x8x8xf32> to vector<56x8xf32>
    %c8 = arith.constant 8 : index
    %c0_60 = arith.constant 0 : index
    %48 = vector.load %arg8[%c8, %c0_60] : memref<64x4xf32, #tpu.memory_space<vmem>>, vector<56x4xf32>
    %c0_61 = arith.constant 0 : index
    %c0_62 = arith.constant 0 : index
    %c0_63 = arith.constant 0 : index
    %49 = vector.load %arg4[%c0_61, %c0_62, %c0_63] : memref<3x8x4xf32, #tpu.memory_space<vmem>>, vector<1x8x4xf32>
    %50 = vector.shape_cast %49 : vector<1x8x4xf32> to vector<8x4xf32>
    %cst_64 = arith.constant dense<0.000000e+00> : vector<56x4xf32>
    %51 = tpu.matmul %47, %50, %cst_64 {dimension_numbers = #tpu.dot_dimension_numbers<[1], [0], [0], [1], [0, 0, 1, 1], [], []>} : vector<56x8xf32>, vector<8x4xf32>, vector<56x4xf32> -> vector<56x4xf32>
    %52 = arith.addf %48, %51 : vector<56x4xf32>
    %c8_65 = arith.constant 8 : index
    %c0_66 = arith.constant 0 : index
    %53 = vector.load %arg8[%c8_65, %c0_66] : memref<64x4xf32, #tpu.memory_space<vmem>>, vector<56x4xf32>
    tpu.vector_store %arg8[%c8_65, %c0_66], %52 {strides = array<i32>} : memref<64x4xf32, #tpu.memory_space<vmem>>, vector<56x4xf32>,
    %c8_67 = arith.constant 8 : index
    %c0_68 = arith.constant 0 : index
    %54 = vector.load %arg9[%c8_67, %c0_68] : memref<64x4xf32, #tpu.memory_space<vmem>>, vector<56x4xf32>
    %c0_69 = arith.constant 0 : index
    %c0_70 = arith.constant 0 : index
    %c0_71 = arith.constant 0 : index
    %55 = vector.load %arg5[%c0_69, %c0_70, %c0_71] : memref<3x8x4xf32, #tpu.memory_space<vmem>>, vector<1x8x4xf32>
    %56 = vector.shape_cast %55 : vector<1x8x4xf32> to vector<8x4xf32>
    %cst_72 = arith.constant dense<0.000000e+00> : vector<56x4xf32>
    %57 = tpu.matmul %47, %56, %cst_72 {dimension_numbers = #tpu.dot_dimension_numbers<[1], [0], [0], [1], [0, 0, 1, 1], [], []>} : vector<56x8xf32>, vector<8x4xf32>, vector<56x4xf32> -> vector<56x4xf32>
    %58 = arith.addf %54, %57 : vector<56x4xf32>
    %c8_73 = arith.constant 8 : index
    %c0_74 = arith.constant 0 : index
    %59 = vector.load %arg9[%c8_73, %c0_74] : memref<64x4xf32, #tpu.memory_space<vmem>>, vector<56x4xf32>
    tpu.vector_store %arg9[%c8_73, %c0_74], %58 {strides = array<i32>} : memref<64x4xf32, #tpu.memory_space<vmem>>, vector<56x4xf32>,
    %c0_75 = arith.constant 0 : index
    %c0_76 = arith.constant 0 : index
    %60 = vector.load %arg8[%c0_75, %c0_76] : memref<64x4xf32, #tpu.memory_space<vmem>>, vector<64x4xf32>
    %61 = vector.shape_cast %60 : vector<64x4xf32> to vector<8x8x4xf32>
    %c0_77 = arith.constant 0 : index
    %c0_78 = arith.constant 0 : index
    %62 = vector.load %arg9[%c0_77, %c0_78] : memref<64x4xf32, #tpu.memory_space<vmem>>, vector<64x4xf32>
    %63 = vector.shape_cast %62 : vector<64x4xf32> to vector<8x8x4xf32>
    %cst_79 = arith.constant 0.000000e+00 : f32
    %64 = vector.broadcast %cst_79 : f32 to vector<8x1x4xf32>
    %65 = vector.extract_strided_slice %63 {offsets = [0, 0, 0], sizes = [8, 7, 4], strides = [1, 1, 1]} : vector<8x8x4xf32> to vector<8x7x4xf32>
    %66 = tpu.concatenate %64, %65 in 1 : vector<8x1x4xf32>, vector<8x7x4xf32> -> vector<8x8x4xf32>
    %67 = arith.addf %61, %66 : vector<8x8x4xf32>
    %c0_80 = arith.constant 0 : index
    %c0_81 = arith.constant 0 : index
    %68 = vector.load %arg6[%c0_80, %c0_81] : memref<1x4xf32, #tpu.memory_space<vmem>>, vector<1x4xf32>
    %69 = vector.shape_cast %68 : vector<1x4xf32> to vector<1x1x4xf32>
    %70 = vector.broadcast %69 : vector<1x1x4xf32> to vector<8x8x4xf32>
    %71 = arith.addf %67, %70 : vector<8x8x4xf32>
    %c0_82 = arith.constant 0 : index
    %c0_83 = arith.constant 0 : index
    %c0_84 = arith.constant 0 : index
    %c0_85 = arith.constant 0 : index
    %72 = vector.load %arg7[%c0_82, %c0_83, %c0_84, %c0_85] : memref<1x8x8x4xf32, #tpu.memory_space<vmem>>, vector<1x8x8x4xf32>
    %73 = vector.shape_cast %72 : vector<1x8x8x4xf32> to vector<8x8x4xf32>
    %74 = vector.shape_cast %71 : vector<8x8x4xf32> to vector<1x8x8x4xf32>
    tpu.vector_store %arg7[%c0_82, %c0_83, %c0_84, %c0_85], %74 {strides = array<i32>} : memref<1x8x8x4xf32, #tpu.memory_space<vmem>>, vector<1x8x8x4xf32>,
    return
  }
  func.func @transform_0(%arg0: i32, %arg1: i32) -> (i32, i32, i32, i32, i32) {
    %c0_i32 = arith.constant 0 : i32
    %c0_i32_0 = arith.constant 0 : i32
    %c0_i32_1 = arith.constant 0 : i32
    %c0_i32_2 = arith.constant 0 : i32
    return %arg0, %arg1, %c0_i32, %c0_i32_0, %c0_i32_1 : i32, i32, i32, i32, i32
  }
  func.func @transform_1(%arg0: i32, %arg1: i32) -> (i32, i32, i32, i32, i32) {
    %c8_i32 = arith.constant 8 : i32
    %0 = arith.muli %arg1, %c8_i32 : i32
    %c1_i32 = arith.constant 1 : i32
    %1 = arith.subi %0, %c1_i32 : i32
    %c0_i32 = arith.constant 0 : i32
    %2 = arith.maxsi %1, %c0_i32 : i32
    %c1_i32_0 = arith.constant 1 : i32
    %c0_i32_1 = arith.constant 0 : i32
    %c0_i32_2 = arith.constant 0 : i32
    %c0_i32_3 = arith.constant 0 : i32
    return %arg0, %2, %c1_i32_0, %c0_i32_1, %c0_i32_2 : i32, i32, i32, i32, i32
  }
  func.func @transform_2(%arg0: i32, %arg1: i32) -> (i32, i32, i32) {
    %c0_i32 = arith.constant 0 : i32
    %c0_i32_0 = arith.constant 0 : i32
    %c0_i32_1 = arith.constant 0 : i32
    %c0_i32_2 = arith.constant 0 : i32
    return %c0_i32, %c0_i32_0, %c0_i32_1 : i32, i32, i32
  }
  func.func @transform_3(%arg0: i32, %arg1: i32) -> (i32, i32, i32) {
    %c0_i32 = arith.constant 0 : i32
    %c0_i32_0 = arith.constant 0 : i32
    %c0_i32_1 = arith.constant 0 : i32
    %c0_i32_2 = arith.constant 0 : i32
    return %c0_i32, %c0_i32_0, %c0_i32_1 : i32, i32, i32
  }
  func.func @transform_4(%arg0: i32, %arg1: i32) -> (i32, i32) {
    %c0_i32 = arith.constant 0 : i32
    %c0_i32_0 = arith.constant 0 : i32
    %c0_i32_1 = arith.constant 0 : i32
    return %c0_i32, %c0_i32_0 : i32, i32
  }
  func.func @transform_5(%arg0: i32, %arg1: i32) -> (i32, i32, i32, i32) {
    %c0_i32 = arith.constant 0 : i32
    %c0_i32_0 = arith.constant 0 : i32
    %c0_i32_1 = arith.constant 0 : i32
    return %arg0, %arg1, %c0_i32, %c0_i32_0 : i32, i32, i32, i32
  }
}

</mosaic_0001>

<llo_original>
// kernel: tpu_custom_call.1
$region0: #{tpu_custom_call.1}
  #allocation0 [shape = 'u32[]', space=smem, size = 0x4, offset = 0x4, fixed_abs, tag = 'smem constant byte address 0x4 - core index']
  #allocation1 [shape = 'u32[144,128]{1,0:T(1,128)}', space=vmem, size = 0x12000, scoped, tag = 'internal scratch']
  #allocation2 [shape = 'f32[64,4]{1,0:T(8,128)}', space=vmem, size = 0x8000, scoped, tag = 'scratch operand']
  #allocation3 [shape = 'f32[64,4]{1,0:T(8,128)}', space=vmem, size = 0x8000, scoped, tag = 'scratch operand']
  %s0 = inlined_call_operand.hbm [shape: f32[2,8,2,8,8], index: 0, kind: input, shape index: {}]
  %s1 = inlined_call_operand.hbm [shape: f32[2,8,2,8,8], index: 1, kind: input, shape index: {}]
  %s2 = inlined_call_operand.vmem [shape: f32[3,8,4], index: 2, kind: input, shape index: {}]
  %s3 = inlined_call_operand.vmem [shape: f32[3,8,4], index: 3, kind: input, shape index: {}]
  %s4 = inlined_call_operand.vmem [shape: f32[1,4], index: 4, kind: input, shape index: {}]
  %s5 = inlined_call_operand.vmem [shape: f32[2,8,8,4], index: 5, kind: output, shape index: {}]
  %s6 = sld [smem:[#allocation0]]
  $region61: #{tpu_custom_call.1} parent=0
    _
  %s8 = ssub.s32 1, %s6
  %s9 = scalar_select 0, %s8, %s6
  $region1: #{tpu_custom_call.1} parent=0
    #allocation4 [shape = 'u8[131072]{0}', space=vmem, size = 0x20000, scoped, tag = 'input window, operand 0']
    #allocation5 [shape = 's32[2]{0}', space=sflag, size = 0x8, scoped, tag = 'scoped memory for tpu_custom_call.1']
    #allocation6 [shape = 'u8[8192]{0}', space=vmem, size = 0x2000, scoped, tag = 'input window, operand 1']
    #allocation7 [shape = 's32[2]{0}', space=sflag, size = 0x8, scoped, tag = 'scoped memory for tpu_custom_call.1']
    %10 = vsyncpa [#allocation5], 0
    %s11 = scalar_lea.sflag [#allocation5], 1
    %12 = vsyncpa %s11, 0
    %13 = vsyncpa [#allocation7], 0
    %s14 = scalar_lea.sflag [#allocation7], 1
    %15 = vsyncpa %s14, 0
    loop: start=0, step=1, limit=4
    $region2: #{tpu_custom_call.1} parent=1 // loop_pre_header
      _
    $region3: #{tpu_custom_call.1} parent=1 // loop_header
      %s17 = sphi 0, %s21
      %p18 = scmp.ge.s32.totalorder %s17, 4
      %s24 = sphi 0, %s36
      %s25 = sphi 0, %s32
      %s26 = sphi 0, %s24
      %s27 = sphi 0, %s25
      %s28 = sphi 0, %s26
      %s29 = sphi 0, %s27
      %s41 = sphi 0, %s43
      %s44 = sphi 0, %s41
      %s45 = sphi 0, %s44
      %s61 = sphi 0, %s45
      %s77 = sphi 0, %s79
      %s80 = sphi 0, %s77
      %s81 = sphi 0, %s80
      %s97 = sphi 0, %s81
      %s101 = sphi 0, %s101
      %s103 = sphi 0, %s101
      %s104 = sphi 0, %s103
      %s118 = sphi 0, %s104
      %s122 = sphi 0, %s122
      %s124 = sphi 0, %s122
      %s125 = sphi 0, %s124
      %s139 = sphi 0, %s125
      %s143 = sphi 0, %s143
      %s145 = sphi 0, %s143
      %s146 = sphi 0, %s145
      %s160 = sphi 0, %s146
      %s168 = sphi 0, %s170
      %s171 = sphi 0, %s168
      %s172 = sphi 0, %s171
      %s188 = sphi 0, %s172
    $region4: #{tpu_custom_call.1} parent=1 // loop_header_branch
      %20 = sbr.rel (%p18) target = $region8
    $region5: #{tpu_custom_call.1} parent=1 // loop_body
      %s22 = ssub.s32 %s17, 1
      %s23 = ssub.s32 %s17, 2
      %s30 = sadd.s32 1, %s25
      %p31 = scmp.ge.s32.totalorder %s30, 1
      %s32 = scalar_select %p31, 0, %s30
      %s33 = sadd.s32 1, %s24
      %s34 = scalar_select %p31, %s33, %s24
      %p35 = scmp.ge.s32.totalorder %s34, 2
      %s36 = scalar_select %p35, 0, %s34
      %s37 = ssub.s32 %s24, %s36
      %s38 = ssub.s32 %s25, %s32
      %s39 = sor.u32 %s37, %s38
      %p40 = scmp.eq.s32.totalorder %s39, 0
      %s42 = sadd.s32 %s41, 1
      %s43 = scalar_select %p40, %s41, %s42
      %p46 = pneg %p40
      %p47 = scmp.eq.s32.totalorder %s17, 1
      %p48 = por %p46, %p47
      %p49 = scmp.ne.s32.totalorder %s41, %s44
      %p50 = scmp.eq.s32.totalorder %s17, 0
      %p51 = por %p49, %p50
      %p52 = scmp.ne.s32.totalorder %s41, %s44
      %p53 = scmp.eq.s32.totalorder %s22, 1
      %p54 = por %p52, %p53
      %p55 = scmp.ne.s32.totalorder %s44, %s45
      %p56 = scmp.eq.s32.totalorder %s22, 0
      %p57 = por %p55, %p56
      %p58 = scmp.ne.s32.totalorder %s44, %s45
      %p59 = scmp.eq.s32.totalorder %s23, 1
      %p60 = por %p58, %p59
      %p62 = scmp.ne.s32.totalorder %s45, %s61
      %p63 = scmp.eq.s32.totalorder %s23, 0
      %p64 = por %p62, %p63
      %s65 = smul.u32 %s25, 8
      %s66 = ssub.s32 %s65, 1
      %p67 = scmp.gt.s32.totalorder %s66, 0
      %s68 = scalar_select %p67, %s66, 0
      %s69 = smul.u32 %s32, 8
      %s70 = ssub.s32 %s69, 1
      %p71 = scmp.gt.s32.totalorder %s70, 0
      %s72 = scalar_select %p71, %s70, 0
      %s73 = ssub.s32 %s24, %s36
      %s74 = ssub.s32 %s68, %s72
      %s75 = sor.u32 %s73, %s74
      %p76 = scmp.eq.s32.totalorder %s75, 0
      %s78 = sadd.s32 %s77, 1
      %s79 = scalar_select %p76, %s77, %s78
      %p82 = pneg %p76
      %p83 = scmp.eq.s32.totalorder %s17, 1
      %p84 = por %p82, %p83
      %p85 = scmp.ne.s32.totalorder %s77, %s80
      %p86 = scmp.eq.s32.totalorder %s17, 0
      %p87 = por %p85, %p86
      %p88 = scmp.ne.s32.totalorder %s77, %s80
      %p89 = scmp.eq.s32.totalorder %s22, 1
      %p90 = por %p88, %p89
      %p91 = scmp.ne.s32.totalorder %s80, %s81
      %p92 = scmp.eq.s32.totalorder %s22, 0
      %p93 = por %p91, %p92
      %p94 = scmp.ne.s32.totalorder %s80, %s81
      %p95 = scmp.eq.s32.totalorder %s23, 1
      %p96 = por %p94, %p95
      %p98 = scmp.ne.s32.totalorder %s81, %s97
      %p99 = scmp.eq.s32.totalorder %s23, 0
      %p100 = por %p98, %p99
      %s102 = sadd.s32 %s101, 1
      %p105 = scmp.eq.s32.totalorder %s17, 1
      %p106 = scmp.ne.s32.totalorder %s101, %s103
      %p107 = scmp.eq.s32.totalorder %s17, 0
      %p108 = por %p106, %p107
      %p109 = scmp.ne.s32.totalorder %s101, %s103
      %p110 = scmp.eq.s32.totalorder %s22, 1
      %p111 = por %p109, %p110
      %p112 = scmp.ne.s32.totalorder %s103, %s104
      %p113 = scmp.eq.s32.totalorder %s22, 0
      %p114 = por %p112, %p113
      %p115 = scmp.ne.s32.totalorder %s103, %s104
      %p116 = scmp.eq.s32.totalorder %s23, 1
      %p117 = por %p115, %p116
      %p119 = scmp.ne.s32.totalorder %s104, %s118
      %p120 = scmp.eq.s32.totalorder %s23, 0
      %p121 = por %p119, %p120
      %s123 = sadd.s32 %s122, 1
      %p126 = scmp.eq.s32.totalorder %s17, 1
      %p127 = scmp.ne.s32.totalorder %s122, %s124
      %p128 = scmp.eq.s32.totalorder %s17, 0
      %p129 = por %p127, %p128
      %p130 = scmp.ne.s32.totalorder %s122, %s124
      %p131 = scmp.eq.s32.totalorder %s22, 1
      %p132 = por %p130, %p131
      %p133 = scmp.ne.s32.totalorder %s124, %s125
      %p134 = scmp.eq.s32.totalorder %s22, 0
      %p135 = por %p133, %p134
      %p136 = scmp.ne.s32.totalorder %s124, %s125
      %p137 = scmp.eq.s32.totalorder %s23, 1
      %p138 = por %p136, %p137
      %p140 = scmp.ne.s32.totalorder %s125, %s139
      %p141 = scmp.eq.s32.totalorder %s23, 0
      %p142 = por %p140, %p141
      %s144 = sadd.s32 %s143, 1
      %p147 = scmp.eq.s32.totalorder %s17, 1
      %p148 = scmp.ne.s32.totalorder %s143, %s145
      %p149 = scmp.eq.s32.totalorder %s17, 0
      %p150 = por %p148, %p149
      %p151 = scmp.ne.s32.totalorder %s143, %s145
      %p152 = scmp.eq.s32.totalorder %s22, 1
      %p153 = por %p151, %p152
      %p154 = scmp.ne.s32.totalorder %s145, %s146
      %p155 = scmp.eq.s32.totalorder %s22, 0
      %p156 = por %p154, %p155
      %p157 = scmp.ne.s32.totalorder %s145, %s146
      %p158 = scmp.eq.s32.totalorder %s23, 1
      %p159 = por %p157, %p158
      %p161 = scmp.ne.s32.totalorder %s146, %s160
      %p162 = scmp.eq.s32.totalorder %s23, 0
      %p163 = por %p161, %p162
      %s164 = ssub.s32 %s24, %s36
      %s165 = ssub.s32 %s25, %s32
      %s166 = sor.u32 %s164, %s165
      %p167 = scmp.eq.s32.totalorder %s166, 0
      %s169 = sadd.s32 %s168, 1
      %s170 = scalar_select %p167, %s168, %s169
      %p173 = pneg %p167
      %p174 = scmp.eq.s32.totalorder %s17, 1
      %p175 = por %p173, %p174
      %p176 = scmp.ne.s32.totalorder %s168, %s171
      %p177 = scmp.eq.s32.totalorder %s17, 0
      %p178 = por %p176, %p177
      %p179 = scmp.ne.s32.totalorder %s168, %s171
      %p180 = scmp.eq.s32.totalorder %s22, 1
      %p181 = por %p179, %p180
      %p182 = scmp.ne.s32.totalorder %s171, %s172
      %p183 = scmp.eq.s32.totalorder %s22, 0
      %p184 = por %p182, %p183
      %p185 = scmp.ne.s32.totalorder %s171, %s172
      %p186 = scmp.eq.s32.totalorder %s23, 1
      %p187 = por %p185, %p186
      %p189 = scmp.ne.s32.totalorder %s172, %s188
      %p190 = scmp.eq.s32.totalorder %s23, 0
      %p191 = por %p189, %p190
      %p192 = scmp.le.s32.totalorder 1, %s17
      %p193 = scmp.lt.s32.totalorder %s17, 3
      %p194 = pnand %p192, %p193
      %p195 = pneg %p194
      // Predicated region
      $region9: #{tpu_custom_call.1} parent=5 // pred_check
        _
      $region10: #{tpu_custom_call.1} parent=5 // pred_check_branch
        %197 = sbr.rel (%p194) target = $region12
      $region11: #{tpu_custom_call.1} parent=5 // pred_region
        %s198 = ssub.s32 %s17, 1
        // Predicated region
        $region13: #{tpu_custom_call.1} parent=11 // pred_check
          %p199 = pneg %p114
        $region14: #{tpu_custom_call.1} parent=11 // pred_check_branch
          %201 = sbr.rel (%p199) target = $region16
        $region15: #{tpu_custom_call.1} parent=11 // pred_region
          _
        $region16: #{tpu_custom_call.1} parent=11 // pred_fallthru
          _
        // Predicated region
        $region17: #{tpu_custom_call.1} parent=11 // pred_check
          %p202 = pneg %p135
        $region18: #{tpu_custom_call.1} parent=11 // pred_check_branch
          %204 = sbr.rel (%p202) target = $region20
        $region19: #{tpu_custom_call.1} parent=11 // pred_region
          _
        $region20: #{tpu_custom_call.1} parent=11 // pred_fallthru
          _
        // Predicated region
        $region21: #{tpu_custom_call.1} parent=11 // pred_check
          %p205 = pneg %p156
        $region22: #{tpu_custom_call.1} parent=11 // pred_check_branch
          %207 = sbr.rel (%p205) target = $region24
        $region23: #{tpu_custom_call.1} parent=11 // pred_region
          _
        $region24: #{tpu_custom_call.1} parent=11 // pred_fallthru
          _
      $region12: #{tpu_custom_call.1} parent=5 // pred_fallthru
        _
      %p208 = scmp.lt.s32.totalorder %s17, 2
      // Predicated region
      $region25: #{tpu_custom_call.1} parent=5 // pred_check
        %p209 = pneg %p208
      $region26: #{tpu_custom_call.1} parent=5 // pred_check_branch
        %211 = sbr.rel (%p209) target = $region28
      $region27: #{tpu_custom_call.1} parent=5 // pred_region
        // Predicated region
        $region29: #{tpu_custom_call.1} parent=27 // pred_check
          %p212 = pneg %p51
        $region30: #{tpu_custom_call.1} parent=27 // pred_check_branch
          %214 = sbr.rel (%p212) target = $region32
        $region31: #{tpu_custom_call.1} parent=27 // pred_region
          %s215 = sand.u32 %s41, 1
          %s216 = scalar_lea.sflag [#allocation5], %s215
          %s217 = sand.u32 %s41, 1
          %s218 = smul.addr %s217, 128
          %s219 = scalar_lea.vmem [#allocation4], %s218
          %s220 = smul.u32 8, %s25
          %s222 = ssub.s32 2048, 2048
          %223 = vsyncadd %s216, %s222
          %s224 = smul.addr %s220, 2
          %s225 = smul.addr %s24, 16
          %s226 = sadd.s32 %s224, %s225
          %s227 = smul.addr %s226, 128
          %s228 = scalar_lea.hbm %s0, %s227
          %s229 = sshll.u32 %s219, 4
          %s230 = int_to_ptr.vmem [resolvable:$true] %s229
          %235 = dma.hbm_to_vmem [thread:$0]  %s228, 2048, %s230, %s216, 128, 128, 8
        $region32: #{tpu_custom_call.1} parent=27 // pred_fallthru
          _
        // Predicated region
        $region33: #{tpu_custom_call.1} parent=27 // pred_check
          %p236 = pneg %p87
        $region34: #{tpu_custom_call.1} parent=27 // pred_check_branch
          %238 = sbr.rel (%p236) target = $region36
        $region35: #{tpu_custom_call.1} parent=27 // pred_region
          %s239 = sand.u32 %s77, 1
          %s240 = scalar_lea.sflag [#allocation7], %s239
          %s241 = sand.u32 %s77, 1
          %s242 = smul.addr %s241, 8
          %s243 = scalar_lea.vmem [#allocation6], %s242
          %s244 = smul.u32 %s25, 8
          %s245 = ssub.s32 %s244, 1
          %p246 = scmp.gt.s32.totalorder %s245, 0
          %s247 = scalar_select %p246, %s245, 0
          %s249 = ssub.s32 128, 128
          %250 = vsyncadd %s240, %s249
          %s251 = smul.addr %s247, 2
          %s252 = sadd.s32 1, %s251
          %s253 = smul.addr %s24, 16
          %s254 = sadd.s32 %s252, %s253
          %s255 = smul.addr %s254, 128
          %s256 = scalar_lea.hbm %s1, %s255
          %s258 = sshll.u32 %s243, 4
          %s259 = int_to_ptr.vmem [resolvable:$true] %s258
          %261 = dma.hbm_to_vmem [thread:$0]  %s256, 128, %s259, %s240
        $region36: #{tpu_custom_call.1} parent=27 // pred_fallthru
          _
      $region28: #{tpu_custom_call.1} parent=5 // pred_fallthru
        _
      %p262 = scmp.le.s32.totalorder 1, %s17
      %p263 = scmp.lt.s32.totalorder %s17, 3
      %p264 = pnand %p262, %p263
      %p265 = pneg %p264
      // Predicated region
      $region37: #{tpu_custom_call.1} parent=5 // pred_check
        _
      $region38: #{tpu_custom_call.1} parent=5 // pred_check_branch
        %267 = sbr.rel (%p264) target = $region40
      $region39: #{tpu_custom_call.1} parent=5 // pred_region
        %s268 = ssub.s32 %s17, 1
        %s269 = sand.u32 %s44, 1
        %s270 = scalar_lea.sflag [#allocation5], %s269
        %s271 = sand.u32 %s44, 1
        %s272 = smul.addr %s271, 128
        %s273 = scalar_lea.vmem [#allocation4], %s272
        // Predicated region
        $region41: #{tpu_custom_call.1} parent=39 // pred_check
          %p274 = pneg %p57
        $region42: #{tpu_custom_call.1} parent=39 // pred_check_branch
          %276 = sbr.rel (%p274) target = $region44
        $region43: #{tpu_custom_call.1} parent=39 // pred_region
          %277 = dma.done %s270, 2048
        $region44: #{tpu_custom_call.1} parent=39 // pred_fallthru
          _
        %s278 = sand.u32 %s80, 1
        %s279 = scalar_lea.sflag [#allocation7], %s278
        %s280 = sand.u32 %s80, 1
        %s281 = smul.addr %s280, 8
        %s282 = scalar_lea.vmem [#allocation6], %s281
        // Predicated region
        $region45: #{tpu_custom_call.1} parent=39 // pred_check
          %p283 = pneg %p93
        $region46: #{tpu_custom_call.1} parent=39 // pred_check_branch
          %285 = sbr.rel (%p283) target = $region48
        $region47: #{tpu_custom_call.1} parent=39 // pred_region
          %286 = dma.done %s279, 128
        $region48: #{tpu_custom_call.1} parent=39 // pred_fallthru
          _
        %s287 = sand.u32 %s44, 1
        %s288 = scalar_lea.sflag [#allocation5], %s287
        %s289 = sand.u32 %s44, 1
        %s290 = smul.addr %s289, 128
        %s291 = scalar_lea.vmem [#allocation4], %s290
        %p292 = pneg %p57
        %p293 = pneg %p54
        %s294 = sand.u32 %s80, 1
        %s295 = scalar_lea.sflag [#allocation7], %s294
        %s296 = sand.u32 %s80, 1
        %s297 = smul.addr %s296, 8
        %s298 = scalar_lea.vmem [#allocation6], %s297
        %p299 = pneg %p93
        %p300 = pneg %p90
        %p301 = pneg %p114
        %p302 = pneg %p111
        %p303 = pneg %p135
        %p304 = pneg %p132
        %p305 = pneg %p156
        %p306 = pneg %p153
        %p307 = pneg %p184
        %p308 = pneg %p181
        %s309 = smul.u32 8, %s27
        %p310 = scmp.lt.s32.totalorder %s26, 1
        %s311 = scalar_select %p310, %s26, 1
        %p312 = scmp.lt.s32.totalorder %s309, 7
        %s313 = scalar_select %p312, %s309, 7
        %s314 = smul.addr %s311, 8
        %s315 = sadd.s32 %s313, %s314
        %s316 = smul.addr %s315, 8
        %s317 = scalar_lea.vmem %s5, %s316
        %s318 = smul.u32 8, %s27
        %s319 = smul.u32 %s27, 8
        %s320 = ssub.s32 %s319, 1
        %p321 = scmp.gt.s32.totalorder %s320, 0
        %s322 = scalar_select %p321, %s320, 0
        %s323 = smul.u32 8, %s27
        %p324 = scmp.lt.s32.totalorder %s26, 1
        %s325 = scalar_select %p324, %s26, 1
        %p326 = scmp.lt.s32.totalorder %s323, 7
        %s327 = scalar_select %p326, %s323, 7
        %s328 = smul.addr %s325, 8
        %s329 = sadd.s32 %s327, %s328
        %s330 = smul.addr %s329, 8
        %s331 = scalar_lea.vmem %s5, %s330
        %s332 = smul.u32 8, %s27
        %v333 = vld [vmem:[%s273] sm:$0xff]
        %v334 = vld [vmem:[%s273 + $0x10] sm:$0xff]
        %v335 = vld [vmem:[%s273 + $0x20] sm:$0xff]
        %v336 = vld [vmem:[%s273 + $0x30] sm:$0xff]
        %v337 = vld [vmem:[%s273 + $0x40] sm:$0xff]
        %v338 = vld [vmem:[%s273 + $0x50] sm:$0xff]
        %v339 = vld [vmem:[%s273 + $0x60] sm:$0xff]
        %v340 = vld [vmem:[%s273 + $0x70] sm:$0xff]
        %s341 = scalar_lea.vmem %s273, 8 [#allocation4]
        %v342 = vld [vmem:[%s341] sm:$0xff]
        %v343 = vld [vmem:[%s341 + $0x10] sm:$0xff]
        %v344 = vld [vmem:[%s341 + $0x20] sm:$0xff]
        %v345 = vld [vmem:[%s341 + $0x30] sm:$0xff]
        %v346 = vld [vmem:[%s341 + $0x40] sm:$0xff]
        %v347 = vld [vmem:[%s341 + $0x50] sm:$0xff]
        %v348 = vld [vmem:[%s341 + $0x60] sm:$0xff]
        %v349 = vld [vmem:[%s341 + $0x70] sm:$0xff]
        %s350 = scalar_lea.vmem %s2, 8
        %v351 = vld [vmem:[%s350] sm:$0xff]
        %vm352 = vcmask 64512
        %v354 = vsel %vm352, %v333, 0
        %v357 = vsel %vm352, %v334, 0
        %v360 = vsel %vm352, %v335, 0
        %v363 = vsel %vm352, %v336, 0
        %v366 = vsel %vm352, %v337, 0
        %v369 = vsel %vm352, %v338, 0
        %v372 = vsel %vm352, %v339, 0
        %v375 = vsel %vm352, %v340, 0
        %377 = vmatprep.subr.mxu0 0.0
        %378 = vmatpush1.msra.mxu0 %v351
        %379 = vmatprep.subr.mxu0 0.0
        %380 = vmatpush1.msra.mxu0 0.0
        %381 = vmatprep.subr.mxu0 0.0
        %382 = vmatpush1.msra.mxu0 0.0
        %383 = vmatprep.subr.mxu0 0.0
        %384 = vmatpush1.msra.mxu0 0.0
        %385 = vmatprep.subr.mxu0 0.0
        %386 = vmatpush1.msra.mxu0 0.0
        %387 = vmatprep.subr.mxu0 0.0
        %388 = vmatpush1.msra.mxu0 0.0
        %389 = vmatprep.subr.mxu0 0.0
        %390 = vmatpush1.msra.mxu0 0.0
        %391 = vmatprep.subr.mxu0 0.0
        %392 = vmatpush1.msra.mxu0 0.0
        %393 = vmatprep.subr.mxu0 0.0
        %394 = vmatpush1.msra.mxu0 0.0
        %395 = vmatprep.subr.mxu0 0.0
        %396 = vmatpush1.msra.mxu0 0.0
        %397 = vmatprep.subr.mxu0 0.0
        %398 = vmatpush1.msra.mxu0 0.0
        %399 = vmatprep.subr.mxu0 0.0
        %400 = vmatpush1.msra.mxu0 0.0
        %401 = vmatprep.subr.mxu0 0.0
        %402 = vmatpush1.msra.mxu0 0.0
        %403 = vmatprep.subr.mxu0 0.0
        %404 = vmatpush1.msra.mxu0 0.0
        %405 = vmatprep.subr.mxu0 0.0
        %406 = vmatpush1.msra.mxu0 0.0
        %407 = vmatprep.subr.mxu0 0.0
        %408 = vmatpush1.msra.mxu0 0.0
        %409 = vmatprep.subr.mxu0 0.0
        %410 = vmatpush1.msra.mxu0 0.0
        %411 = vmatprep.subr.mxu0 0.0
        %412 = vmatpush1.msra.mxu0 0.0
        %413 = vmatprep.subr.mxu0 0.0
        %414 = vmatpush1.msra.mxu0 0.0
        %415 = vmatprep.subr.mxu0 0.0
        %416 = vmatpush1.msra.mxu0 0.0
        %417 = vmatprep.subr.mxu0 0.0
        %418 = vmatpush1.msra.mxu0 0.0
        %419 = vmatprep.subr.mxu0 0.0
        %420 = vmatpush1.msra.mxu0 0.0
        %421 = vmatprep.subr.mxu0 0.0
        %422 = vmatpush1.msra.mxu0 0.0
        %423 = vmatprep.subr.mxu0 0.0
        %424 = vmatpush1.msra.mxu0 0.0
        %425 = vmatprep.subr.mxu0 0.0
        %426 = vmatpush1.msra.mxu0 0.0
        %427 = vmatprep.subr.mxu0 0.0
        %428 = vmatpush1.msra.mxu0 0.0
        %429 = vmatprep.subr.mxu0 0.0
        %430 = vmatpush1.msra.mxu0 0.0
        %431 = vmatprep.subr.mxu0 0.0
        %432 = vmatpush1.msra.mxu0 0.0
        %433 = vmatprep.subr.mxu0 0.0
        %434 = vmatpush1.msra.mxu0 0.0
        %435 = vmatprep.subr.mxu0 0.0
        %436 = vmatpush1.msra.mxu0 0.0
        %437 = vmatprep.subr.mxu0 0.0
        %438 = vmatpush1.msra.mxu0 0.0
        %439 = vmatprep.subr.mxu0 0.0
        %440 = vmatpush1.msra.mxu0 0.0
        %441 = vmatprep.mubr.f32.mxu0 0.0
        %442 = vmatmul.mubr.f32.gmra.mrb[0].mxu0 %v354
        %v443 = vpop.f32.mrb[0].mxu0
        %v444 = vadd.f32 0.0, %v443
        %v445 = vpop.f32.mrb[0].mxu0
        %446 = vmatprep.mubr.f32.mxu0 0.0
        %447 = vmatmul.mubr.f32.gmra.mrb[0].mxu0 %v357
        %v448 = vpop.f32.mrb[0].mxu0
        %v449 = vadd.f32 0.0, %v448
        %v450 = vpop.f32.mrb[0].mxu0
        %451 = vmatprep.mubr.f32.mxu0 0.0
        %452 = vmatmul.mubr.f32.gmra.mrb[0].mxu0 %v360
        %v453 = vpop.f32.mrb[0].mxu0
        %v454 = vadd.f32 0.0, %v453
        %v455 = vpop.f32.mrb[0].mxu0
        %456 = vmatprep.mubr.f32.mxu0 0.0
        %457 = vmatmul.mubr.f32.gmra.mrb[0].mxu0 %v363
        %v458 = vpop.f32.mrb[0].mxu0
        %v459 = vadd.f32 0.0, %v458
        %v460 = vpop.f32.mrb[0].mxu0
        %461 = vmatprep.mubr.f32.mxu0 0.0
        %462 = vmatmul.mubr.f32.gmra.mrb[0].mxu0 %v366
        %v463 = vpop.f32.mrb[0].mxu0
        %v464 = vadd.f32 0.0, %v463
        %v465 = vpop.f32.mrb[0].mxu0
        %466 = vmatprep.mubr.f32.mxu0 0.0
        %467 = vmatmul.mubr.f32.gmra.mrb[0].mxu0 %v369
        %v468 = vpop.f32.mrb[0].mxu0
        %v469 = vadd.f32 0.0, %v468
        %v470 = vpop.f32.mrb[0].mxu0
        %471 = vmatprep.mubr.f32.mxu0 0.0
        %472 = vmatmul.mubr.f32.gmra.mrb[0].mxu0 %v372
        %v473 = vpop.f32.mrb[0].mxu0
        %v474 = vadd.f32 0.0, %v473
        %v475 = vpop.f32.mrb[0].mxu0
        %476 = vmatprep.mubr.f32.mxu0 0.0
        %477 = vmatmul.mubr.f32.gmra.mrb[0].mxu0 %v375
        %v478 = vpop.f32.mrb[0].mxu0
        %v479 = vadd.f32 0.0, %v478
        %v480 = vpop.f32.mrb[0].mxu0
        %481 = vdwg.mxu0
        %vm482 = vcmask 31744
        %483 = vst.msk [vmem:[#allocation2] sm:$0xff] %vm482, %v444
        %484 = vst.msk [vmem:[#allocation2 + $0x8] sm:$0xff] %vm482, %v449
        %485 = vst.msk [vmem:[#allocation2 + $0x10] sm:$0xff] %vm482, %v454
        %486 = vst.msk [vmem:[#allocation2 + $0x18] sm:$0xff] %vm482, %v459
        %487 = vst.msk [vmem:[#allocation2 + $0x20] sm:$0xff] %vm482, %v464
        %488 = vst.msk [vmem:[#allocation2 + $0x28] sm:$0xff] %vm482, %v469
        %489 = vst.msk [vmem:[#allocation2 + $0x30] sm:$0xff] %vm482, %v474
        %490 = vst.msk [vmem:[#allocation2 + $0x38] sm:$0xff] %vm482, %v479
        %v491 = vld [vmem:[#allocation2] sm:$0xff]
        %v492 = vld [vmem:[#allocation2 + $0x8] sm:$0xff]
        %v493 = vld [vmem:[#allocation2 + $0x10] sm:$0xff]
        %v494 = vld [vmem:[#allocation2 + $0x18] sm:$0xff]
        %v495 = vld [vmem:[#allocation2 + $0x20] sm:$0xff]
        %v496 = vld [vmem:[#allocation2 + $0x28] sm:$0xff]
        %v497 = vld [vmem:[#allocation2 + $0x30] sm:$0xff]
        %v498 = vld [vmem:[#allocation2 + $0x38] sm:$0xff]
        %s499 = scalar_lea.vmem %s2, 16
        %v500 = vld [vmem:[%s499] sm:$0xff]
        %v502 = vsel %vm352, %v342, 0
        %v505 = vsel %vm352, %v343, 0
        %v508 = vsel %vm352, %v344, 0
        %v511 = vsel %vm352, %v345, 0
        %v514 = vsel %vm352, %v346, 0
        %v517 = vsel %vm352, %v347, 0
        %v520 = vsel %vm352, %v348, 0
        %v523 = vsel %vm352, %v349, 0
        %525 = vmatprep.subr.mxu0 0.0
        %526 = vmatpush1.msra.mxu0 %v500
        %527 = vmatprep.subr.mxu0 0.0
        %528 = vmatpush1.msra.mxu0 0.0
        %529 = vmatprep.subr.mxu0 0.0
        %530 = vmatpush1.msra.mxu0 0.0
        %531 = vmatprep.subr.mxu0 0.0
        %532 = vmatpush1.msra.mxu0 0.0
        %533 = vmatprep.subr.mxu0 0.0
        %534 = vmatpush1.msra.mxu0 0.0
        %535 = vmatprep.subr.mxu0 0.0
        %536 = vmatpush1.msra.mxu0 0.0
        %537 = vmatprep.subr.mxu0 0.0
        %538 = vmatpush1.msra.mxu0 0.0
        %539 = vmatprep.subr.mxu0 0.0
        %540 = vmatpush1.msra.mxu0 0.0
        %541 = vmatprep.subr.mxu0 0.0
        %542 = vmatpush1.msra.mxu0 0.0
        %543 = vmatprep.subr.mxu0 0.0
        %544 = vmatpush1.msra.mxu0 0.0
        %545 = vmatprep.subr.mxu0 0.0
        %546 = vmatpush1.msra.mxu0 0.0
        %547 = vmatprep.subr.mxu0 0.0
        %548 = vmatpush1.msra.mxu0 0.0
        %549 = vmatprep.subr.mxu0 0.0
        %550 = vmatpush1.msra.mxu0 0.0
        %551 = vmatprep.subr.mxu0 0.0
        %552 = vmatpush1.msra.mxu0 0.0
        %553 = vmatprep.subr.mxu0 0.0
        %554 = vmatpush1.msra.mxu0 0.0
        %555 = vmatprep.subr.mxu0 0.0
        %556 = vmatpush1.msra.mxu0 0.0
        %557 = vmatprep.subr.mxu0 0.0
        %558 = vmatpush1.msra.mxu0 0.0
        %559 = vmatprep.subr.mxu0 0.0
        %560 = vmatpush1.msra.mxu0 0.0
        %561 = vmatprep.subr.mxu0 0.0
        %562 = vmatpush1.msra.mxu0 0.0
        %563 = vmatprep.subr.mxu0 0.0
        %564 = vmatpush1.msra.mxu0 0.0
        %565 = vmatprep.subr.mxu0 0.0
        %566 = vmatpush1.msra.mxu0 0.0
        %567 = vmatprep.subr.mxu0 0.0
        %568 = vmatpush1.msra.mxu0 0.0
        %569 = vmatprep.subr.mxu0 0.0
        %570 = vmatpush1.msra.mxu0 0.0
        %571 = vmatprep.subr.mxu0 0.0
        %572 = vmatpush1.msra.mxu0 0.0
        %573 = vmatprep.subr.mxu0 0.0
        %574 = vmatpush1.msra.mxu0 0.0
        %575 = vmatprep.subr.mxu0 0.0
        %576 = vmatpush1.msra.mxu0 0.0
        %577 = vmatprep.subr.mxu0 0.0
        %578 = vmatpush1.msra.mxu0 0.0
        %579 = vmatprep.subr.mxu0 0.0
        %580 = vmatpush1.msra.mxu0 0.0
        %581 = vmatprep.subr.mxu0 0.0
        %582 = vmatpush1.msra.mxu0 0.0
        %583 = vmatprep.subr.mxu0 0.0
        %584 = vmatpush1.msra.mxu0 0.0
        %585 = vmatprep.subr.mxu0 0.0
        %586 = vmatpush1.msra.mxu0 0.0
        %587 = vmatprep.subr.mxu0 0.0
        %588 = vmatpush1.msra.mxu0 0.0
        %589 = vmatprep.mubr.f32.mxu0 0.0
        %590 = vmatmul.mubr.f32.gmra.mrb[0].mxu0 %v502
        %v591 = vpop.f32.mrb[0].mxu0
        %v592 = vadd.f32 0.0, %v591
        %v593 = vpop.f32.mrb[0].mxu0
        %594 = vmatprep.mubr.f32.mxu0 0.0
        %595 = vmatmul.mubr.f32.gmra.mrb[0].mxu0 %v505
        %v596 = vpop.f32.mrb[0].mxu0
        %v597 = vadd.f32 0.0, %v596
        %v598 = vpop.f32.mrb[0].mxu0
        %599 = vmatprep.mubr.f32.mxu0 0.0
        %600 = vmatmul.mubr.f32.gmra.mrb[0].mxu0 %v508
        %v601 = vpop.f32.mrb[0].mxu0
        %v602 = vadd.f32 0.0, %v601
        %v603 = vpop.f32.mrb[0].mxu0
        %604 = vmatprep.mubr.f32.mxu0 0.0
        %605 = vmatmul.mubr.f32.gmra.mrb[0].mxu0 %v511
        %v606 = vpop.f32.mrb[0].mxu0
        %v607 = vadd.f32 0.0, %v606
        %v608 = vpop.f32.mrb[0].mxu0
        %609 = vmatprep.mubr.f32.mxu0 0.0
        %610 = vmatmul.mubr.f32.gmra.mrb[0].mxu0 %v514
        %v611 = vpop.f32.mrb[0].mxu0
        %v612 = vadd.f32 0.0, %v611
        %v613 = vpop.f32.mrb[0].mxu0
        %614 = vmatprep.mubr.f32.mxu0 0.0
        %615 = vmatmul.mubr.f32.gmra.mrb[0].mxu0 %v517
        %v616 = vpop.f32.mrb[0].mxu0
        %v617 = vadd.f32 0.0, %v616
        %v618 = vpop.f32.mrb[0].mxu0
        %619 = vmatprep.mubr.f32.mxu0 0.0
        %620 = vmatmul.mubr.f32.gmra.mrb[0].mxu0 %v520
        %v621 = vpop.f32.mrb[0].mxu0
        %v622 = vadd.f32 0.0, %v621
        %v623 = vpop.f32.mrb[0].mxu0
        %624 = vmatprep.mubr.f32.mxu0 0.0
        %625 = vmatmul.mubr.f32.gmra.mrb[0].mxu0 %v523
        %v626 = vpop.f32.mrb[0].mxu0
        %v627 = vadd.f32 0.0, %v626
        %v628 = vpop.f32.mrb[0].mxu0
        %629 = vdwg.mxu0
        %v630 = vadd.f32 %v491, %v592
        %v631 = vadd.f32 %v492, %v597
        %v632 = vadd.f32 %v493, %v602
        %v633 = vadd.f32 %v494, %v607
        %v634 = vadd.f32 %v495, %v612
        %v635 = vadd.f32 %v496, %v617
        %v636 = vadd.f32 %v497, %v622
        %v637 = vadd.f32 %v498, %v627
        %638 = vst.msk [vmem:[#allocation2] sm:$0xff] %vm482, %v630
        %639 = vst.msk [vmem:[#allocation2 + $0x8] sm:$0xff] %vm482, %v631
        %640 = vst.msk [vmem:[#allocation2 + $0x10] sm:$0xff] %vm482, %v632
        %641 = vst.msk [vmem:[#allocation2 + $0x18] sm:$0xff] %vm482, %v633
        %642 = vst.msk [vmem:[#allocation2 + $0x20] sm:$0xff] %vm482, %v634
        %643 = vst.msk [vmem:[#allocation2 + $0x28] sm:$0xff] %vm482, %v635
        %644 = vst.msk [vmem:[#allocation2 + $0x30] sm:$0xff] %vm482, %v636
        %645 = vst.msk [vmem:[#allocation2 + $0x38] sm:$0xff] %vm482, %v637
        %s646 = scalar_lea.vmem %s3, 8
        %v647 = vld [vmem:[%s646] sm:$0xff]
        %648 = vmatprep.subr.mxu0 0.0
        %649 = vmatpush1.msra.mxu0 %v647
        %650 = vmatprep.subr.mxu0 0.0
        %651 = vmatpush1.msra.mxu0 0.0
        %652 = vmatprep.subr.mxu0 0.0
        %653 = vmatpush1.msra.mxu0 0.0
        %654 = vmatprep.subr.mxu0 0.0
        %655 = vmatpush1.msra.mxu0 0.0
        %656 = vmatprep.subr.mxu0 0.0
        %657 = vmatpush1.msra.mxu0 0.0
        %658 = vmatprep.subr.mxu0 0.0
        %659 = vmatpush1.msra.mxu0 0.0
        %660 = vmatprep.subr.mxu0 0.0
        %661 = vmatpush1.msra.mxu0 0.0
        %662 = vmatprep.subr.mxu0 0.0
        %663 = vmatpush1.msra.mxu0 0.0
        %664 = vmatprep.subr.mxu0 0.0
        %665 = vmatpush1.msra.mxu0 0.0
        %666 = vmatprep.subr.mxu0 0.0
        %667 = vmatpush1.msra.mxu0 0.0
        %668 = vmatprep.subr.mxu0 0.0
        %669 = vmatpush1.msra.mxu0 0.0
        %670 = vmatprep.subr.mxu0 0.0
        %671 = vmatpush1.msra.mxu0 0.0
        %672 = vmatprep.subr.mxu0 0.0
        %673 = vmatpush1.msra.mxu0 0.0
        %674 = vmatprep.subr.mxu0 0.0
        %675 = vmatpush1.msra.mxu0 0.0
        %676 = vmatprep.subr.mxu0 0.0
        %677 = vmatpush1.msra.mxu0 0.0
        %678 = vmatprep.subr.mxu0 0.0
        %679 = vmatpush1.msra.mxu0 0.0
        %680 = vmatprep.subr.mxu0 0.0
        %681 = vmatpush1.msra.mxu0 0.0
        %682 = vmatprep.subr.mxu0 0.0
        %683 = vmatpush1.msra.mxu0 0.0
        %684 = vmatprep.subr.mxu0 0.0
        %685 = vmatpush1.msra.mxu0 0.0
        %686 = vmatprep.subr.mxu0 0.0
        %687 = vmatpush1.msra.mxu0 0.0
        %688 = vmatprep.subr.mxu0 0.0
        %689 = vmatpush1.msra.mxu0 0.0
        %690 = vmatprep.subr.mxu0 0.0
        %691 = vmatpush1.msra.mxu0 0.0
        %692 = vmatprep.subr.mxu0 0.0
        %693 = vmatpush1.msra.mxu0 0.0
        %694 = vmatprep.subr.mxu0 0.0
        %695 = vmatpush1.msra.mxu0 0.0
        %696 = vmatprep.subr.mxu0 0.0
        %697 = vmatpush1.msra.mxu0 0.0
        %698 = vmatprep.subr.mxu0 0.0
        %699 = vmatpush1.msra.mxu0 0.0
        %700 = vmatprep.subr.mxu0 0.0
        %701 = vmatpush1.msra.mxu0 0.0
        %702 = vmatprep.subr.mxu0 0.0
        %703 = vmatpush1.msra.mxu0 0.0
        %704 = vmatprep.subr.mxu0 0.0
        %705 = vmatpush1.msra.mxu0 0.0
        %706 = vmatprep.subr.mxu0 0.0
        %707 = vmatpush1.msra.mxu0 0.0
        %708 = vmatprep.subr.mxu0 0.0
        %709 = vmatpush1.msra.mxu0 0.0
        %710 = vmatprep.subr.mxu0 0.0
        %711 = vmatpush1.msra.mxu0 0.0
        %712 = vmatprep.mubr.f32.mxu0 0.0
        %713 = vmatmul.mubr.f32.gmra.mrb[0].mxu0 %v354
        %v714 = vpop.f32.mrb[0].mxu0
        %v715 = vadd.f32 0.0, %v714
        %v716 = vpop.f32.mrb[0].mxu0
        %717 = vmatprep.mubr.f32.mxu0 0.0
        %718 = vmatmul.mubr.f32.gmra.mrb[0].mxu0 %v357
        %v719 = vpop.f32.mrb[0].mxu0
        %v720 = vadd.f32 0.0, %v719
        %v721 = vpop.f32.mrb[0].mxu0
        %722 = vmatprep.mubr.f32.mxu0 0.0
        %723 = vmatmul.mubr.f32.gmra.mrb[0].mxu0 %v360
        %v724 = vpop.f32.mrb[0].mxu0
        %v725 = vadd.f32 0.0, %v724
        %v726 = vpop.f32.mrb[0].mxu0
        %727 = vmatprep.mubr.f32.mxu0 0.0
        %728 = vmatmul.mubr.f32.gmra.mrb[0].mxu0 %v363
        %v729 = vpop.f32.mrb[0].mxu0
        %v730 = vadd.f32 0.0, %v729
        %v731 = vpop.f32.mrb[0].mxu0
        %732 = vmatprep.mubr.f32.mxu0 0.0
        %733 = vmatmul.mubr.f32.gmra.mrb[0].mxu0 %v366
        %v734 = vpop.f32.mrb[0].mxu0
        %v735 = vadd.f32 0.0, %v734
        %v736 = vpop.f32.mrb[0].mxu0
        %737 = vmatprep.mubr.f32.mxu0 0.0
        %738 = vmatmul.mubr.f32.gmra.mrb[0].mxu0 %v369
        %v739 = vpop.f32.mrb[0].mxu0
        %v740 = vadd.f32 0.0, %v739
        %v741 = vpop.f32.mrb[0].mxu0
        %742 = vmatprep.mubr.f32.mxu0 0.0
        %743 = vmatmul.mubr.f32.gmra.mrb[0].mxu0 %v372
        %v744 = vpop.f32.mrb[0].mxu0
        %v745 = vadd.f32 0.0, %v744
        %v746 = vpop.f32.mrb[0].mxu0
        %747 = vmatprep.mubr.f32.mxu0 0.0
        %748 = vmatmul.mubr.f32.gmra.mrb[0].mxu0 %v375
        %v749 = vpop.f32.mrb[0].mxu0
        %v750 = vadd.f32 0.0, %v749
        %v751 = vpop.f32.mrb[0].mxu0
        %752 = vdwg.mxu0
        %753 = vst.msk [vmem:[#allocation3] sm:$0xff] %vm482, %v715
        %754 = vst.msk [vmem:[#allocation3 + $0x8] sm:$0xff] %vm482, %v720
        %755 = vst.msk [vmem:[#allocation3 + $0x10] sm:$0xff] %vm482, %v725
        %756 = vst.msk [vmem:[#allocation3 + $0x18] sm:$0xff] %vm482, %v730
        %757 = vst.msk [vmem:[#allocation3 + $0x20] sm:$0xff] %vm482, %v735
        %758 = vst.msk [vmem:[#allocation3 + $0x28] sm:$0xff] %vm482, %v740
        %759 = vst.msk [vmem:[#allocation3 + $0x30] sm:$0xff] %vm482, %v745
        %760 = vst.msk [vmem:[#allocation3 + $0x38] sm:$0xff] %vm482, %v750
        %v761 = vld [vmem:[#allocation3] sm:$0xff]
        %v762 = vld [vmem:[#allocation3 + $0x8] sm:$0xff]
        %v763 = vld [vmem:[#allocation3 + $0x10] sm:$0xff]
        %v764 = vld [vmem:[#allocation3 + $0x18] sm:$0xff]
        %v765 = vld [vmem:[#allocation3 + $0x20] sm:$0xff]
        %v766 = vld [vmem:[#allocation3 + $0x28] sm:$0xff]
        %v767 = vld [vmem:[#allocation3 + $0x30] sm:$0xff]
        %v768 = vld [vmem:[#allocation3 + $0x38] sm:$0xff]
        %s769 = scalar_lea.vmem %s3, 16
        %v770 = vld [vmem:[%s769] sm:$0xff]
        %771 = vmatprep.subr.mxu0 0.0
        %772 = vmatpush1.msra.mxu0 %v770
        %773 = vmatprep.subr.mxu0 0.0
        %774 = vmatpush1.msra.mxu0 0.0
        %775 = vmatprep.subr.mxu0 0.0
        %776 = vmatpush1.msra.mxu0 0.0
        %777 = vmatprep.subr.mxu0 0.0
        %778 = vmatpush1.msra.mxu0 0.0
        %779 = vmatprep.subr.mxu0 0.0
        %780 = vmatpush1.msra.mxu0 0.0
        %781 = vmatprep.subr.mxu0 0.0
        %782 = vmatpush1.msra.mxu0 0.0
        %783 = vmatprep.subr.mxu0 0.0
        %784 = vmatpush1.msra.mxu0 0.0
        %785 = vmatprep.subr.mxu0 0.0
        %786 = vmatpush1.msra.mxu0 0.0
        %787 = vmatprep.subr.mxu0 0.0
        %788 = vmatpush1.msra.mxu0 0.0
        %789 = vmatprep.subr.mxu0 0.0
        %790 = vmatpush1.msra.mxu0 0.0
        %791 = vmatprep.subr.mxu0 0.0
        %792 = vmatpush1.msra.mxu0 0.0
        %793 = vmatprep.subr.mxu0 0.0
        %794 = vmatpush1.msra.mxu0 0.0
        %795 = vmatprep.subr.mxu0 0.0
        %796 = vmatpush1.msra.mxu0 0.0
        %797 = vmatprep.subr.mxu0 0.0
        %798 = vmatpush1.msra.mxu0 0.0
        %799 = vmatprep.subr.mxu0 0.0
        %800 = vmatpush1.msra.mxu0 0.0
        %801 = vmatprep.subr.mxu0 0.0
        %802 = vmatpush1.msra.mxu0 0.0
        %803 = vmatprep.subr.mxu0 0.0
        %804 = vmatpush1.msra.mxu0 0.0
        %805 = vmatprep.subr.mxu0 0.0
        %806 = vmatpush1.msra.mxu0 0.0
        %807 = vmatprep.subr.mxu0 0.0
        %808 = vmatpush1.msra.mxu0 0.0
        %809 = vmatprep.subr.mxu0 0.0
        %810 = vmatpush1.msra.mxu0 0.0
        %811 = vmatprep.subr.mxu0 0.0
        %812 = vmatpush1.msra.mxu0 0.0
        %813 = vmatprep.subr.mxu0 0.0
        %814 = vmatpush1.msra.mxu0 0.0
        %815 = vmatprep.subr.mxu0 0.0
        %816 = vmatpush1.msra.mxu0 0.0
        %817 = vmatprep.subr.mxu0 0.0
        %818 = vmatpush1.msra.mxu0 0.0
        %819 = vmatprep.subr.mxu0 0.0
        %820 = vmatpush1.msra.mxu0 0.0
        %821 = vmatprep.subr.mxu0 0.0
        %822 = vmatpush1.msra.mxu0 0.0
        %823 = vmatprep.subr.mxu0 0.0
        %824 = vmatpush1.msra.mxu0 0.0
        %825 = vmatprep.subr.mxu0 0.0
        %826 = vmatpush1.msra.mxu0 0.0
        %827 = vmatprep.subr.mxu0 0.0
        %828 = vmatpush1.msra.mxu0 0.0
        %829 = vmatprep.subr.mxu0 0.0
        %830 = vmatpush1.msra.mxu0 0.0
        %831 = vmatprep.subr.mxu0 0.0
        %832 = vmatpush1.msra.mxu0 0.0
        %833 = vmatprep.subr.mxu0 0.0
        %834 = vmatpush1.msra.mxu0 0.0
        %835 = vmatprep.mubr.f32.mxu0 0.0
        %836 = vmatmul.mubr.f32.gmra.mrb[0].mxu0 %v502
        %v837 = vpop.f32.mrb[0].mxu0
        %v838 = vadd.f32 0.0, %v837
        %v839 = vpop.f32.mrb[0].mxu0
        %840 = vmatprep.mubr.f32.mxu0 0.0
        %841 = vmatmul.mubr.f32.gmra.mrb[0].mxu0 %v505
        %v842 = vpop.f32.mrb[0].mxu0
        %v843 = vadd.f32 0.0, %v842
        %v844 = vpop.f32.mrb[0].mxu0
        %845 = vmatprep.mubr.f32.mxu0 0.0
        %846 = vmatmul.mubr.f32.gmra.mrb[0].mxu0 %v508
        %v847 = vpop.f32.mrb[0].mxu0
        %v848 = vadd.f32 0.0, %v847
        %v849 = vpop.f32.mrb[0].mxu0
        %850 = vmatprep.mubr.f32.mxu0 0.0
        %851 = vmatmul.mubr.f32.gmra.mrb[0].mxu0 %v511
        %v852 = vpop.f32.mrb[0].mxu0
        %v853 = vadd.f32 0.0, %v852
        %v854 = vpop.f32.mrb[0].mxu0
        %855 = vmatprep.mubr.f32.mxu0 0.0
        %856 = vmatmul.mubr.f32.gmra.mrb[0].mxu0 %v514
        %v857 = vpop.f32.mrb[0].mxu0
        %v858 = vadd.f32 0.0, %v857
        %v859 = vpop.f32.mrb[0].mxu0
        %860 = vmatprep.mubr.f32.mxu0 0.0
        %861 = vmatmul.mubr.f32.gmra.mrb[0].mxu0 %v517
        %v862 = vpop.f32.mrb[0].mxu0
        %v863 = vadd.f32 0.0, %v862
        %v864 = vpop.f32.mrb[0].mxu0
        %865 = vmatprep.mubr.f32.mxu0 0.0
        %866 = vmatmul.mubr.f32.gmra.mrb[0].mxu0 %v520
        %v867 = vpop.f32.mrb[0].mxu0
        %v868 = vadd.f32 0.0, %v867
        %v869 = vpop.f32.mrb[0].mxu0
        %870 = vmatprep.mubr.f32.mxu0 0.0
        %871 = vmatmul.mubr.f32.gmra.mrb[0].mxu0 %v523
        %v872 = vpop.f32.mrb[0].mxu0
        %v873 = vadd.f32 0.0, %v872
        %v874 = vpop.f32.mrb[0].mxu0
        %875 = vdwg.mxu0
        %v876 = vadd.f32 %v761, %v838
        %v877 = vadd.f32 %v762, %v843
        %v878 = vadd.f32 %v763, %v848
        %v879 = vadd.f32 %v764, %v853
        %v880 = vadd.f32 %v765, %v858
        %v881 = vadd.f32 %v766, %v863
        %v882 = vadd.f32 %v767, %v868
        %v883 = vadd.f32 %v768, %v873
        %884 = vst.msk [vmem:[#allocation3] sm:$0xff] %vm482, %v876
        %885 = vst.msk [vmem:[#allocation3 + $0x8] sm:$0xff] %vm482, %v877
        %886 = vst.msk [vmem:[#allocation3 + $0x10] sm:$0xff] %vm482, %v878
        %887 = vst.msk [vmem:[#allocation3 + $0x18] sm:$0xff] %vm482, %v879
        %888 = vst.msk [vmem:[#allocation3 + $0x20] sm:$0xff] %vm482, %v880
        %889 = vst.msk [vmem:[#allocation3 + $0x28] sm:$0xff] %vm482, %v881
        %890 = vst.msk [vmem:[#allocation3 + $0x30] sm:$0xff] %vm482, %v882
        %891 = vst.msk [vmem:[#allocation3 + $0x38] sm:$0xff] %vm482, %v883
        %v892 = vld [vmem:[%s282] sm:$0xff]
        %p893 = scmp.gt.s32.totalorder %s27, 0
        %s894 = scalar_select %p893, 1, 0
        %s895 = scvt.s32.f32 %s894
        %v896 = vstv %s895
        %v897 = vmul.f32 %v892, %v896
        %v898 = vld [vmem:[#allocation2] sm:$0xff]
        %v899 = vld [vmem:[%s2] sm:$0xff]
        %v901 = vsel %vm352, %v897, 0
        %903 = vmatprep.subr.mxu0 0.0
        %904 = vmatpush1.msra.mxu0 %v899
        %905 = vmatprep.subr.mxu0 0.0
        %906 = vmatpush1.msra.mxu0 0.0
        %907 = vmatprep.subr.mxu0 0.0
        %908 = vmatpush1.msra.mxu0 0.0
        %909 = vmatprep.subr.mxu0 0.0
        %910 = vmatpush1.msra.mxu0 0.0
        %911 = vmatprep.subr.mxu0 0.0
        %912 = vmatpush1.msra.mxu0 0.0
        %913 = vmatprep.subr.mxu0 0.0
        %914 = vmatpush1.msra.mxu0 0.0
        %915 = vmatprep.subr.mxu0 0.0
        %916 = vmatpush1.msra.mxu0 0.0
        %917 = vmatprep.subr.mxu0 0.0
        %918 = vmatpush1.msra.mxu0 0.0
        %919 = vmatprep.subr.mxu0 0.0
        %920 = vmatpush1.msra.mxu0 0.0
        %921 = vmatprep.subr.mxu0 0.0
        %922 = vmatpush1.msra.mxu0 0.0
        %923 = vmatprep.subr.mxu0 0.0
        %924 = vmatpush1.msra.mxu0 0.0
        %925 = vmatprep.subr.mxu0 0.0
        %926 = vmatpush1.msra.mxu0 0.0
        %927 = vmatprep.subr.mxu0 0.0
        %928 = vmatpush1.msra.mxu0 0.0
        %929 = vmatprep.subr.mxu0 0.0
        %930 = vmatpush1.msra.mxu0 0.0
        %931 = vmatprep.subr.mxu0 0.0
        %932 = vmatpush1.msra.mxu0 0.0
        %933 = vmatprep.subr.mxu0 0.0
        %934 = vmatpush1.msra.mxu0 0.0
        %935 = vmatprep.subr.mxu0 0.0
        %936 = vmatpush1.msra.mxu0 0.0
        %937 = vmatprep.subr.mxu0 0.0
        %938 = vmatpush1.msra.mxu0 0.0
        %939 = vmatprep.subr.mxu0 0.0
        %940 = vmatpush1.msra.mxu0 0.0
        %941 = vmatprep.subr.mxu0 0.0
        %942 = vmatpush1.msra.mxu0 0.0
        %943 = vmatprep.subr.mxu0 0.0
        %944 = vmatpush1.msra.mxu0 0.0
        %945 = vmatprep.subr.mxu0 0.0
        %946 = vmatpush1.msra.mxu0 0.0
        %947 = vmatprep.subr.mxu0 0.0
        %948 = vmatpush1.msra.mxu0 0.0
        %949 = vmatprep.subr.mxu0 0.0
        %950 = vmatpush1.msra.mxu0 0.0
        %951 = vmatprep.subr.mxu0 0.0
        %952 = vmatpush1.msra.mxu0 0.0
        %953 = vmatprep.subr.mxu0 0.0
        %954 = vmatpush1.msra.mxu0 0.0
        %955 = vmatprep.subr.mxu0 0.0
        %956 = vmatpush1.msra.mxu0 0.0
        %957 = vmatprep.subr.mxu0 0.0
        %958 = vmatpush1.msra.mxu0 0.0
        %959 = vmatprep.subr.mxu0 0.0
        %960 = vmatpush1.msra.mxu0 0.0
        %961 = vmatprep.subr.mxu0 0.0
        %962 = vmatpush1.msra.mxu0 0.0
        %963 = vmatprep.subr.mxu0 0.0
        %964 = vmatpush1.msra.mxu0 0.0
        %965 = vmatprep.subr.mxu0 0.0
        %966 = vmatpush1.msra.mxu0 0.0
        %967 = vmatprep.mubr.f32.mxu0 0.0
        %968 = vmatmul.mubr.f32.gmra.mrb[0].mxu0 %v901
        %v969 = vpop.f32.mrb[0].mxu0
        %v970 = vadd.f32 0.0, %v969
        %v971 = vpop.f32.mrb[0].mxu0
        %972 = vdwg.mxu0
        %v973 = vadd.f32 %v898, %v970
        %974 = vst.msk [vmem:[#allocation2] sm:$0xff] %vm482, %v973
        %v975 = vld [vmem:[#allocation3] sm:$0xff]
        %v976 = vld [vmem:[%s3] sm:$0xff]
        %977 = vmatprep.subr.mxu0 0.0
        %978 = vmatpush1.msra.mxu0 %v976
        %979 = vmatprep.subr.mxu0 0.0
        %980 = vmatpush1.msra.mxu0 0.0
        %981 = vmatprep.subr.mxu0 0.0
        %982 = vmatpush1.msra.mxu0 0.0
        %983 = vmatprep.subr.mxu0 0.0
        %984 = vmatpush1.msra.mxu0 0.0
        %985 = vmatprep.subr.mxu0 0.0
        %986 = vmatpush1.msra.mxu0 0.0
        %987 = vmatprep.subr.mxu0 0.0
        %988 = vmatpush1.msra.mxu0 0.0
        %989 = vmatprep.subr.mxu0 0.0
        %990 = vmatpush1.msra.mxu0 0.0
        %991 = vmatprep.subr.mxu0 0.0
        %992 = vmatpush1.msra.mxu0 0.0
        %993 = vmatprep.subr.mxu0 0.0
        %994 = vmatpush1.msra.mxu0 0.0
        %995 = vmatprep.subr.mxu0 0.0
        %996 = vmatpush1.msra.mxu0 0.0
        %997 = vmatprep.subr.mxu0 0.0
        %998 = vmatpush1.msra.mxu0 0.0
        %999 = vmatprep.subr.mxu0 0.0
        %1000 = vmatpush1.msra.mxu0 0.0
        %1001 = vmatprep.subr.mxu0 0.0
        %1002 = vmatpush1.msra.mxu0 0.0
        %1003 = vmatprep.subr.mxu0 0.0
        %1004 = vmatpush1.msra.mxu0 0.0
        %1005 = vmatprep.subr.mxu0 0.0
        %1006 = vmatpush1.msra.mxu0 0.0
        %1007 = vmatprep.subr.mxu0 0.0
        %1008 = vmatpush1.msra.mxu0 0.0
        %1009 = vmatprep.subr.mxu0 0.0
        %1010 = vmatpush1.msra.mxu0 0.0
        %1011 = vmatprep.subr.mxu0 0.0
        %1012 = vmatpush1.msra.mxu0 0.0
        %1013 = vmatprep.subr.mxu0 0.0
        %1014 = vmatpush1.msra.mxu0 0.0
        %1015 = vmatprep.subr.mxu0 0.0
        %1016 = vmatpush1.msra.mxu0 0.0
        %1017 = vmatprep.subr.mxu0 0.0
        %1018 = vmatpush1.msra.mxu0 0.0
        %1019 = vmatprep.subr.mxu0 0.0
        %1020 = vmatpush1.msra.mxu0 0.0
        %1021 = vmatprep.subr.mxu0 0.0
        %1022 = vmatpush1.msra.mxu0 0.0
        %1023 = vmatprep.subr.mxu0 0.0
        %1024 = vmatpush1.msra.mxu0 0.0
        %1025 = vmatprep.subr.mxu0 0.0
        %1026 = vmatpush1.msra.mxu0 0.0
        %1027 = vmatprep.subr.mxu0 0.0
        %1028 = vmatpush1.msra.mxu0 0.0
        %1029 = vmatprep.subr.mxu0 0.0
        %1030 = vmatpush1.msra.mxu0 0.0
        %1031 = vmatprep.subr.mxu0 0.0
        %1032 = vmatpush1.msra.mxu0 0.0
        %1033 = vmatprep.subr.mxu0 0.0
        %1034 = vmatpush1.msra.mxu0 0.0
        %1035 = vmatprep.subr.mxu0 0.0
        %1036 = vmatpush1.msra.mxu0 0.0
        %1037 = vmatprep.subr.mxu0 0.0
        %1038 = vmatpush1.msra.mxu0 0.0
        %1039 = vmatprep.subr.mxu0 0.0
        %1040 = vmatpush1.msra.mxu0 0.0
        %1041 = vmatprep.mubr.f32.mxu0 0.0
        %1042 = vmatmul.mubr.f32.gmra.mrb[0].mxu0 %v901
        %v1043 = vpop.f32.mrb[0].mxu0
        %v1044 = vadd.f32 0.0, %v1043
        %v1045 = vpop.f32.mrb[0].mxu0
        %1046 = vdwg.mxu0
        %v1047 = vadd.f32 %v975, %v1044
        %1048 = vst.msk [vmem:[#allocation3] sm:$0xff] %vm482, %v1047
        %v1049 = vld [vmem:[%s341] sm:$0xff]
        %v1050 = vld [vmem:[%s341 + $0x10] sm:$0xff]
        %v1051 = vld [vmem:[%s341 + $0x20] sm:$0xff]
        %v1052 = vld [vmem:[%s341 + $0x30] sm:$0xff]
        %v1053 = vld [vmem:[%s341 + $0x40] sm:$0xff]
        %v1054 = vld [vmem:[%s341 + $0x50] sm:$0xff]
        %v1055 = vld [vmem:[%s341 + $0x60] sm:$0xff]
        %v1056 = vld [vmem:[#allocation2 + $0x8] sm:$0xff]
        %v1057 = vld [vmem:[#allocation2 + $0x10] sm:$0xff]
        %v1058 = vld [vmem:[#allocation2 + $0x18] sm:$0xff]
        %v1059 = vld [vmem:[#allocation2 + $0x20] sm:$0xff]
        %v1060 = vld [vmem:[#allocation2 + $0x28] sm:$0xff]
        %v1061 = vld [vmem:[#allocation2 + $0x30] sm:$0xff]
        %v1062 = vld [vmem:[#allocation2 + $0x38] sm:$0xff]
        %v1063 = vld [vmem:[%s2] sm:$0xff]
        %v1065 = vsel %vm352, %v1049, 0
        %v1068 = vsel %vm352, %v1050, 0
        %v1071 = vsel %vm352, %v1051, 0
        %v1074 = vsel %vm352, %v1052, 0
        %v1077 = vsel %vm352, %v1053, 0
        %v1080 = vsel %vm352, %v1054, 0
        %v1083 = vsel %vm352, %v1055, 0
        %1085 = vmatprep.subr.mxu0 0.0
        %1086 = vmatpush1.msra.mxu0 %v1063
        %1087 = vmatprep.subr.mxu0 0.0
        %1088 = vmatpush1.msra.mxu0 0.0
        %1089 = vmatprep.subr.mxu0 0.0
        %1090 = vmatpush1.msra.mxu0 0.0
        %1091 = vmatprep.subr.mxu0 0.0
        %1092 = vmatpush1.msra.mxu0 0.0
        %1093 = vmatprep.subr.mxu0 0.0
        %1094 = vmatpush1.msra.mxu0 0.0
        %1095 = vmatprep.subr.mxu0 0.0
        %1096 = vmatpush1.msra.mxu0 0.0
        %1097 = vmatprep.subr.mxu0 0.0
        %1098 = vmatpush1.msra.mxu0 0.0
        %1099 = vmatprep.subr.mxu0 0.0
        %1100 = vmatpush1.msra.mxu0 0.0
        %1101 = vmatprep.subr.mxu0 0.0
        %1102 = vmatpush1.msra.mxu0 0.0
        %1103 = vmatprep.subr.mxu0 0.0
        %1104 = vmatpush1.msra.mxu0 0.0
        %1105 = vmatprep.subr.mxu0 0.0
        %1106 = vmatpush1.msra.mxu0 0.0
        %1107 = vmatprep.subr.mxu0 0.0
        %1108 = vmatpush1.msra.mxu0 0.0
        %1109 = vmatprep.subr.mxu0 0.0
        %1110 = vmatpush1.msra.mxu0 0.0
        %1111 = vmatprep.subr.mxu0 0.0
        %1112 = vmatpush1.msra.mxu0 0.0
        %1113 = vmatprep.subr.mxu0 0.0
        %1114 = vmatpush1.msra.mxu0 0.0
        %1115 = vmatprep.subr.mxu0 0.0
        %1116 = vmatpush1.msra.mxu0 0.0
        %1117 = vmatprep.subr.mxu0 0.0
        %1118 = vmatpush1.msra.mxu0 0.0
        %1119 = vmatprep.subr.mxu0 0.0
        %1120 = vmatpush1.msra.mxu0 0.0
        %1121 = vmatprep.subr.mxu0 0.0
        %1122 = vmatpush1.msra.mxu0 0.0
        %1123 = vmatprep.subr.mxu0 0.0
        %1124 = vmatpush1.msra.mxu0 0.0
        %1125 = vmatprep.subr.mxu0 0.0
        %1126 = vmatpush1.msra.mxu0 0.0
        %1127 = vmatprep.subr.mxu0 0.0
        %1128 = vmatpush1.msra.mxu0 0.0
        %1129 = vmatprep.subr.mxu0 0.0
        %1130 = vmatpush1.msra.mxu0 0.0
        %1131 = vmatprep.subr.mxu0 0.0
        %1132 = vmatpush1.msra.mxu0 0.0
        %1133 = vmatprep.subr.mxu0 0.0
        %1134 = vmatpush1.msra.mxu0 0.0
        %1135 = vmatprep.subr.mxu0 0.0
        %1136 = vmatpush1.msra.mxu0 0.0
        %1137 = vmatprep.subr.mxu0 0.0
        %1138 = vmatpush1.msra.mxu0 0.0
        %1139 = vmatprep.subr.mxu0 0.0
        %1140 = vmatpush1.msra.mxu0 0.0
        %1141 = vmatprep.subr.mxu0 0.0
        %1142 = vmatpush1.msra.mxu0 0.0
        %1143 = vmatprep.subr.mxu0 0.0
        %1144 = vmatpush1.msra.mxu0 0.0
        %1145 = vmatprep.subr.mxu0 0.0
        %1146 = vmatpush1.msra.mxu0 0.0
        %1147 = vmatprep.subr.mxu0 0.0
        %1148 = vmatpush1.msra.mxu0 0.0
        %1149 = vmatprep.mubr.f32.mxu0 0.0
        %1150 = vmatmul.mubr.f32.gmra.mrb[0].mxu0 %v1065
        %v1151 = vpop.f32.mrb[0].mxu0
        %v1152 = vadd.f32 0.0, %v1151
        %v1153 = vpop.f32.mrb[0].mxu0
        %1154 = vmatprep.mubr.f32.mxu0 0.0
        %1155 = vmatmul.mubr.f32.gmra.mrb[0].mxu0 %v1068
        %v1156 = vpop.f32.mrb[0].mxu0
        %v1157 = vadd.f32 0.0, %v1156
        %v1158 = vpop.f32.mrb[0].mxu0
        %1159 = vmatprep.mubr.f32.mxu0 0.0
        %1160 = vmatmul.mubr.f32.gmra.mrb[0].mxu0 %v1071
        %v1161 = vpop.f32.mrb[0].mxu0
        %v1162 = vadd.f32 0.0, %v1161
        %v1163 = vpop.f32.mrb[0].mxu0
        %1164 = vmatprep.mubr.f32.mxu0 0.0
        %1165 = vmatmul.mubr.f32.gmra.mrb[0].mxu0 %v1074
        %v1166 = vpop.f32.mrb[0].mxu0
        %v1167 = vadd.f32 0.0, %v1166
        %v1168 = vpop.f32.mrb[0].mxu0
        %1169 = vmatprep.mubr.f32.mxu0 0.0
        %1170 = vmatmul.mubr.f32.gmra.mrb[0].mxu0 %v1077
        %v1171 = vpop.f32.mrb[0].mxu0
        %v1172 = vadd.f32 0.0, %v1171
        %v1173 = vpop.f32.mrb[0].mxu0
        %1174 = vmatprep.mubr.f32.mxu0 0.0
        %1175 = vmatmul.mubr.f32.gmra.mrb[0].mxu0 %v1080
        %v1176 = vpop.f32.mrb[0].mxu0
        %v1177 = vadd.f32 0.0, %v1176
        %v1178 = vpop.f32.mrb[0].mxu0
        %1179 = vmatprep.mubr.f32.mxu0 0.0
        %1180 = vmatmul.mubr.f32.gmra.mrb[0].mxu0 %v1083
        %v1181 = vpop.f32.mrb[0].mxu0
        %v1182 = vadd.f32 0.0, %v1181
        %v1183 = vpop.f32.mrb[0].mxu0
        %1184 = vdwg.mxu0
        %v1185 = vadd.f32 %v1056, %v1152
        %v1186 = vadd.f32 %v1057, %v1157
        %v1187 = vadd.f32 %v1058, %v1162
        %v1188 = vadd.f32 %v1059, %v1167
        %v1189 = vadd.f32 %v1060, %v1172
        %v1190 = vadd.f32 %v1061, %v1177
        %v1191 = vadd.f32 %v1062, %v1182
        %1192 = vst.msk [vmem:[#allocation2 + $0x8] sm:$0xff] %vm482, %v1185
        %1193 = vst.msk [vmem:[#allocation2 + $0x10] sm:$0xff] %vm482, %v1186
        %1194 = vst.msk [vmem:[#allocation2 + $0x18] sm:$0xff] %vm482, %v1187
        %1195 = vst.msk [vmem:[#allocation2 + $0x20] sm:$0xff] %vm482, %v1188
        %1196 = vst.msk [vmem:[#allocation2 + $0x28] sm:$0xff] %vm482, %v1189
        %1197 = vst.msk [vmem:[#allocation2 + $0x30] sm:$0xff] %vm482, %v1190
        %1198 = vst.msk [vmem:[#allocation2 + $0x38] sm:$0xff] %vm482, %v1191
        %v1199 = vld [vmem:[#allocation3 + $0x8] sm:$0xff]
        %v1200 = vld [vmem:[#allocation3 + $0x10] sm:$0xff]
        %v1201 = vld [vmem:[#allocation3 + $0x18] sm:$0xff]
        %v1202 = vld [vmem:[#allocation3 + $0x20] sm:$0xff]
        %v1203 = vld [vmem:[#allocation3 + $0x28] sm:$0xff]
        %v1204 = vld [vmem:[#allocation3 + $0x30] sm:$0xff]
        %v1205 = vld [vmem:[#allocation3 + $0x38] sm:$0xff]
        %v1206 = vld [vmem:[%s3] sm:$0xff]
        %1207 = vmatprep.subr.mxu0 0.0
        %1208 = vmatpush1.msra.mxu0 %v1206
        %1209 = vmatprep.subr.mxu0 0.0
        %1210 = vmatpush1.msra.mxu0 0.0
        %1211 = vmatprep.subr.mxu0 0.0
        %1212 = vmatpush1.msra.mxu0 0.0
        %1213 = vmatprep.subr.mxu0 0.0
        %1214 = vmatpush1.msra.mxu0 0.0
        %1215 = vmatprep.subr.mxu0 0.0
        %1216 = vmatpush1.msra.mxu0 0.0
        %1217 = vmatprep.subr.mxu0 0.0
        %1218 = vmatpush1.msra.mxu0 0.0
        %1219 = vmatprep.subr.mxu0 0.0
        %1220 = vmatpush1.msra.mxu0 0.0
        %1221 = vmatprep.subr.mxu0 0.0
        %1222 = vmatpush1.msra.mxu0 0.0
        %1223 = vmatprep.subr.mxu0 0.0
        %1224 = vmatpush1.msra.mxu0 0.0
        %1225 = vmatprep.subr.mxu0 0.0
        %1226 = vmatpush1.msra.mxu0 0.0
        %1227 = vmatprep.subr.mxu0 0.0
        %1228 = vmatpush1.msra.mxu0 0.0
        %1229 = vmatprep.subr.mxu0 0.0
        %1230 = vmatpush1.msra.mxu0 0.0
        %1231 = vmatprep.subr.mxu0 0.0
        %1232 = vmatpush1.msra.mxu0 0.0
        %1233 = vmatprep.subr.mxu0 0.0
        %1234 = vmatpush1.msra.mxu0 0.0
        %1235 = vmatprep.subr.mxu0 0.0
        %1236 = vmatpush1.msra.mxu0 0.0
        %1237 = vmatprep.subr.mxu0 0.0
        %1238 = vmatpush1.msra.mxu0 0.0
        %1239 = vmatprep.subr.mxu0 0.0
        %1240 = vmatpush1.msra.mxu0 0.0
        %1241 = vmatprep.subr.mxu0 0.0
        %1242 = vmatpush1.msra.mxu0 0.0
        %1243 = vmatprep.subr.mxu0 0.0
        %1244 = vmatpush1.msra.mxu0 0.0
        %1245 = vmatprep.subr.mxu0 0.0
        %1246 = vmatpush1.msra.mxu0 0.0
        %1247 = vmatprep.subr.mxu0 0.0
        %1248 = vmatpush1.msra.mxu0 0.0
        %1249 = vmatprep.subr.mxu0 0.0
        %1250 = vmatpush1.msra.mxu0 0.0
        %1251 = vmatprep.subr.mxu0 0.0
        %1252 = vmatpush1.msra.mxu0 0.0
        %1253 = vmatprep.subr.mxu0 0.0
        %1254 = vmatpush1.msra.mxu0 0.0
        %1255 = vmatprep.subr.mxu0 0.0
        %1256 = vmatpush1.msra.mxu0 0.0
        %1257 = vmatprep.subr.mxu0 0.0
        %1258 = vmatpush1.msra.mxu0 0.0
        %1259 = vmatprep.subr.mxu0 0.0
        %1260 = vmatpush1.msra.mxu0 0.0
        %1261 = vmatprep.subr.mxu0 0.0
        %1262 = vmatpush1.msra.mxu0 0.0
        %1263 = vmatprep.subr.mxu0 0.0
        %1264 = vmatpush1.msra.mxu0 0.0
        %1265 = vmatprep.subr.mxu0 0.0
        %1266 = vmatpush1.msra.mxu0 0.0
        %1267 = vmatprep.subr.mxu0 0.0
        %1268 = vmatpush1.msra.mxu0 0.0
        %1269 = vmatprep.subr.mxu0 0.0
        %1270 = vmatpush1.msra.mxu0 0.0
        %1271 = vmatprep.mubr.f32.mxu0 0.0
        %1272 = vmatmul.mubr.f32.gmra.mrb[0].mxu0 %v1065
        %v1273 = vpop.f32.mrb[0].mxu0
        %v1274 = vadd.f32 0.0, %v1273
        %v1275 = vpop.f32.mrb[0].mxu0
        %1276 = vmatprep.mubr.f32.mxu0 0.0
        %1277 = vmatmul.mubr.f32.gmra.mrb[0].mxu0 %v1068
        %v1278 = vpop.f32.mrb[0].mxu0
        %v1279 = vadd.f32 0.0, %v1278
        %v1280 = vpop.f32.mrb[0].mxu0
        %1281 = vmatprep.mubr.f32.mxu0 0.0
        %1282 = vmatmul.mubr.f32.gmra.mrb[0].mxu0 %v1071
        %v1283 = vpop.f32.mrb[0].mxu0
        %v1284 = vadd.f32 0.0, %v1283
        %v1285 = vpop.f32.mrb[0].mxu0
        %1286 = vmatprep.mubr.f32.mxu0 0.0
        %1287 = vmatmul.mubr.f32.gmra.mrb[0].mxu0 %v1074
        %v1288 = vpop.f32.mrb[0].mxu0
        %v1289 = vadd.f32 0.0, %v1288
        %v1290 = vpop.f32.mrb[0].mxu0
        %1291 = vmatprep.mubr.f32.mxu0 0.0
        %1292 = vmatmul.mubr.f32.gmra.mrb[0].mxu0 %v1077
        %v1293 = vpop.f32.mrb[0].mxu0
        %v1294 = vadd.f32 0.0, %v1293
        %v1295 = vpop.f32.mrb[0].mxu0
        %1296 = vmatprep.mubr.f32.mxu0 0.0
        %1297 = vmatmul.mubr.f32.gmra.mrb[0].mxu0 %v1080
        %v1298 = vpop.f32.mrb[0].mxu0
        %v1299 = vadd.f32 0.0, %v1298
        %v1300 = vpop.f32.mrb[0].mxu0
        %1301 = vmatprep.mubr.f32.mxu0 0.0
        %1302 = vmatmul.mubr.f32.gmra.mrb[0].mxu0 %v1083
        %v1303 = vpop.f32.mrb[0].mxu0
        %v1304 = vadd.f32 0.0, %v1303
        %v1305 = vpop.f32.mrb[0].mxu0
        %1306 = vdwg.mxu0
        %v1307 = vadd.f32 %v1199, %v1274
        %v1308 = vadd.f32 %v1200, %v1279
        %v1309 = vadd.f32 %v1201, %v1284
        %v1310 = vadd.f32 %v1202, %v1289
        %v1311 = vadd.f32 %v1203, %v1294
        %v1312 = vadd.f32 %v1204, %v1299
        %v1313 = vadd.f32 %v1205, %v1304
        %1314 = vst.msk [vmem:[#allocation3 + $0x8] sm:$0xff] %vm482, %v1307
        %1315 = vst.msk [vmem:[#allocation3 + $0x10] sm:$0xff] %vm482, %v1308
        %1316 = vst.msk [vmem:[#allocation3 + $0x18] sm:$0xff] %vm482, %v1309
        %1317 = vst.msk [vmem:[#allocation3 + $0x20] sm:$0xff] %vm482, %v1310
        %1318 = vst.msk [vmem:[#allocation3 + $0x28] sm:$0xff] %vm482, %v1311
        %1319 = vst.msk [vmem:[#allocation3 + $0x30] sm:$0xff] %vm482, %v1312
        %1320 = vst.msk [vmem:[#allocation3 + $0x38] sm:$0xff] %vm482, %v1313
        %v1321 = vld [vmem:[#allocation2] sm:$0xff]
        %v1322 = vld [vmem:[#allocation2 + $0x8] sm:$0xff]
        %v1323 = vld [vmem:[#allocation2 + $0x10] sm:$0xff]
        %v1324 = vld [vmem:[#allocation2 + $0x18] sm:$0xff]
        %v1325 = vld [vmem:[#allocation2 + $0x20] sm:$0xff]
        %v1326 = vld [vmem:[#allocation2 + $0x28] sm:$0xff]
        %v1327 = vld [vmem:[#allocation2 + $0x30] sm:$0xff]
        %v1328 = vld [vmem:[#allocation2 + $0x38] sm:$0xff]
        %v1329 = vld [vmem:[#allocation3] sm:$0xff]
        %v1330 = vld [vmem:[#allocation3 + $0x8] sm:$0xff]
        %v1331 = vld [vmem:[#allocation3 + $0x10] sm:$0xff]
        %v1332 = vld [vmem:[#allocation3 + $0x18] sm:$0xff]
        %v1333 = vld [vmem:[#allocation3 + $0x20] sm:$0xff]
        %v1334 = vld [vmem:[#allocation3 + $0x28] sm:$0xff]
        %v1335 = vld [vmem:[#allocation3 + $0x30] sm:$0xff]
        %v1336 = vld [vmem:[#allocation3 + $0x38] sm:$0xff]
        %v1345 = vrot.slane %v1329, 7
        %v1346 = vrot.slane %v1330, 7
        %v1347 = vrot.slane %v1331, 7
        %v1348 = vrot.slane %v1332, 7
        %v1349 = vrot.slane %v1333, 7
        %v1350 = vrot.slane %v1334, 7
        %v1351 = vrot.slane %v1335, 7
        %v1352 = vrot.slane %v1336, 7
        %vm1361 = vcmask 1040384
        %v1362 = vsel %vm1361, 0.0, %v1345
        %v1363 = vsel %vm1361, 0.0, %v1346
        %v1364 = vsel %vm1361, 0.0, %v1347
        %v1365 = vsel %vm1361, 0.0, %v1348
        %v1366 = vsel %vm1361, 0.0, %v1349
        %v1367 = vsel %vm1361, 0.0, %v1350
        %v1368 = vsel %vm1361, 0.0, %v1351
        %v1369 = vsel %vm1361, 0.0, %v1352
        %v1370 = vadd.f32 %v1321, %v1362
        %v1371 = vadd.f32 %v1322, %v1363
        %v1372 = vadd.f32 %v1323, %v1364
        %v1373 = vadd.f32 %v1324, %v1365
        %v1374 = vadd.f32 %v1325, %v1366
        %v1375 = vadd.f32 %v1326, %v1367
        %v1376 = vadd.f32 %v1327, %v1368
        %v1377 = vadd.f32 %v1328, %v1369
        %v1378 = vld [vmem:[%s4] sm:$0x1]
        %v1380 = vlaneseq
        %v1381 = vshrl.u32 %v1380, 7
        %v1382 = vsub.s32 0, %v1381
        %v1383 = vrot.slane %v1378, %v1382
        %v1385 = vadd.f32 %v1370, %v1383
        %v1386 = vadd.f32 %v1371, %v1383
        %v1387 = vadd.f32 %v1372, %v1383
        %v1388 = vadd.f32 %v1373, %v1383
        %v1389 = vadd.f32 %v1374, %v1383
        %v1390 = vadd.f32 %v1375, %v1383
        %v1391 = vadd.f32 %v1376, %v1383
        %v1392 = vadd.f32 %v1377, %v1383
        %1393 = vst.msk [vmem:[%s331] sm:$0xff] %vm482, %v1385
        %1394 = vst.msk [vmem:[%s331 + $0x8] sm:$0xff] %vm482, %v1386
        %1395 = vst.msk [vmem:[%s331 + $0x10] sm:$0xff] %vm482, %v1387
        %1396 = vst.msk [vmem:[%s331 + $0x18] sm:$0xff] %vm482, %v1388
        %1397 = vst.msk [vmem:[%s331 + $0x20] sm:$0xff] %vm482, %v1389
        %1398 = vst.msk [vmem:[%s331 + $0x28] sm:$0xff] %vm482, %v1390
        %1399 = vst.msk [vmem:[%s331 + $0x30] sm:$0xff] %vm482, %v1391
        %1400 = vst.msk [vmem:[%s331 + $0x38] sm:$0xff] %vm482, %v1392
        %s1401 = smul.u32 8, %s27
        %p1402 = scmp.lt.s32.totalorder %s26, 1
        %s1403 = scalar_select %p1402, %s26, 1
        %p1404 = scmp.lt.s32.totalorder %s1401, 7
        %s1405 = scalar_select %p1404, %s1401, 7
        %s1406 = smul.addr %s1403, 8
        %s1407 = sadd.s32 %s1405, %s1406
        %s1408 = smul.addr %s1407, 8
        %s1409 = scalar_lea.vmem %s5, %s1408
        // Predicated region
        $region49: #{tpu_custom_call.1} parent=39 // pred_check
          %p1410 = pneg %p181
        $region50: #{tpu_custom_call.1} parent=39 // pred_check_branch
          %1412 = sbr.rel (%p1410) target = $region52
        $region51: #{tpu_custom_call.1} parent=39 // pred_region
          %s1413 = smul.u32 8, %s27
        $region52: #{tpu_custom_call.1} parent=39 // pred_fallthru
          _
      $region40: #{tpu_custom_call.1} parent=5 // pred_fallthru
        _
      %p1414 = scmp.le.s32.totalorder 2, %s17
      // Predicated region
      $region53: #{tpu_custom_call.1} parent=5 // pred_check
        %p1415 = pneg %p1414
      $region54: #{tpu_custom_call.1} parent=5 // pred_check_branch
        %1417 = sbr.rel (%p1415) target = $region56
      $region55: #{tpu_custom_call.1} parent=5 // pred_region
        %s1418 = ssub.s32 %s17, 2
        // Predicated region
        $region57: #{tpu_custom_call.1} parent=55 // pred_check
          %p1419 = pneg %p187
        $region58: #{tpu_custom_call.1} parent=55 // pred_check_branch
          %1421 = sbr.rel (%p1419) target = $region60
        $region59: #{tpu_custom_call.1} parent=55 // pred_region
          %s1422 = smul.u32 8, %s29
          %p1423 = scmp.lt.s32.totalorder %s28, 1
          %s1424 = scalar_select %p1423, %s28, 1
          %p1425 = scmp.lt.s32.totalorder %s1422, 7
          %s1426 = scalar_select %p1425, %s1422, 7
          %s1427 = smul.addr %s1424, 8
          %s1428 = sadd.s32 %s1426, %s1427
          %s1429 = smul.addr %s1428, 8
          %s1430 = scalar_lea.vmem %s5, %s1429
        $region60: #{tpu_custom_call.1} parent=55 // pred_fallthru
          _
      $region56: #{tpu_custom_call.1} parent=5 // pred_fallthru
        _
    $region6: #{tpu_custom_call.1} parent=1 // loop_footer
      %s21 = sadd.s32 1, %s17
    $region7: #{tpu_custom_call.1} parent=1 // loop_footer_branch
      %16 = sbr.rel target = $region3
    $region8: #{tpu_custom_call.1} parent=1 // loop_exit
      _
    %1431 = vsyncpa [#allocation5], 1
    %s1432 = scalar_lea.sflag [#allocation5], 1
    %1433 = vsyncpa %s1432, 1
    %1434 = vsyncpa [#allocation7], 1
    %s1435 = scalar_lea.sflag [#allocation7], 1
    %1436 = vsyncpa %s1435, 1

</llo_original>
